<compile_context>
chip_gen: v7x
topology: tpu7x:2x2x1
jax: 0.10.0
libtpu: 0.0.40
codegen_flags: <defaults>
</compile_context>

<pallas_src>
from functools import partial

import jax
import jax.numpy as jnp
from jax import lax
from jax.experimental import pallas as pl
from jax.experimental.pallas import tpu as pltpu


# ------------------------------ kernel body ----------------------------------

def _lstm_gates_ifog(gates, c, H):
    """Gate nonlinearity with columns pre-permuted to (i, f, o, g)."""
    sig = jax.nn.sigmoid(gates[:, 0:3 * H])          # one contiguous EUP push
    i = sig[:, 0:H]
    f = sig[:, H:2 * H]
    o = sig[:, 2 * H:3 * H]
    g = jnp.tanh(gates[:, 3 * H:4 * H])
    c_new = f * c + i * g
    h_new = o * jnp.tanh(c_new)
    return h_new, c_new


def make_seq2seq_kernel(B, S_src, S_trg, H, Mp):
    """Fused encoder LSTM + (folded) attention + decoder LSTM + fc kernel."""

    def kernel(x_src_ref, x_trg_ref,
               enc_wx_ref, enc_wh_ref, enc_b_ref,
               dec_wx_ref, dec_wc_ref, dec_wh_ref, dec_b_ref,
               fc_w_ref, fc_b_ref,
               out_ref):
        f32 = jnp.float32

        # -------- Encoder --------
        # Hoisted input projection: one (S_src*B, H) @ (H, 4H) matmul.
        enc_xp = jnp.dot(x_src_ref[...], enc_wx_ref[...],
                         preferred_element_type=f32)          # (S_src*B, 4H)
        enc_wh = enc_wh_ref[...]
        enc_b = jnp.broadcast_to(enc_b_ref[...], (B, 4 * H))  # hoisted

        h = jnp.zeros((B, H), f32)                            # nn.LSTM zero init
        c = jnp.zeros((B, H), f32)
        ctx = jnp.zeros((B, H), f32)
        for t in range(S_src):                                # static full unroll
            gates = (enc_xp[t * B:(t + 1) * B, :]
                     + jnp.dot(h, enc_wh, preferred_element_type=f32)
                     + enc_b)
            h, c = _lstm_gates_ifog(gates, c, H)
            ctx = ctx + h
        # softmax over a size-1 score dim == 1  =>  context = sum_t enc_h_t.

        # -------- Decoder LSTM --------
        dec_xp = jnp.dot(x_trg_ref[...], dec_wx_ref[...],
                         preferred_element_type=f32)          # (S_trg*B, 4H)
        dec_wh = dec_wh_ref[...]
        # Time-invariant context contribution folded into the bias (once).
        dec_b = (jnp.broadcast_to(dec_b_ref[...], (B, 4 * H))
                 + jnp.dot(ctx, dec_wc_ref[...], preferred_element_type=f32))

        hs = []
        for t in range(S_trg):                                # static full unroll
            gates = (dec_xp[t * B:(t + 1) * B, :]
                     + jnp.dot(h, dec_wh, preferred_element_type=f32)
                     + dec_b)
            h, c = _lstm_gates_ifog(gates, c, H)
            hs.append(h)

        M = S_trg * B
        if Mp > M:                                            # sublane-align fc rows
            hs.append(jnp.zeros((Mp - M, H), f32))
        h_all = jnp.concatenate(hs, axis=0)                   # (Mp, H)

        # -------- fc projection: lane/sublane-dense, unmasked full store --------
        out_ref[...] = (jnp.dot(h_all, fc_w_ref[...],
                                preferred_element_type=f32) + fc_b_ref[...])

    return kernel


# ------------------------------ param handling --------------------------------

def init_params(key, src_vocab, trg_vocab, H):
    ks = jax.random.split(key, 12)
    s = 1.0 / (H ** 0.5)

    def u(k, shape):
        return jax.random.uniform(k, shape, jnp.float32, -s, s)

    return dict(
        emb_src=u(ks[0], (src_vocab, H)).at[0].set(0.0),     # padding_idx=0
        emb_trg=u(ks[1], (trg_vocab, H)).at[0].set(0.0),     # padding_idx=0
        enc_wih_t=u(ks[2], (H, 4 * H)),                      # W_ih^T (i,f,g,o cols)
        enc_whh_t=u(ks[3], (H, 4 * H)),                      # W_hh^T
        enc_b=u(ks[4], (1, 4 * H)) + u(ks[5], (1, 4 * H)),   # b_ih + b_hh
        dec_wih_t=u(ks[6], (2 * H, 4 * H)),
        dec_whh_t=u(ks[7], (H, 4 * H)),
        dec_b=u(ks[8], (1, 4 * H)) + u(ks[9], (1, 4 * H)),
        fc_w_t=u(ks[10], (H, trg_vocab)),
        fc_b=u(ks[11], (1, trg_vocab)),
    )


def prepare_params(params):
    """One-time parameter transform (call once, reuse across forward calls).

    Reorders gate columns (i,f,g,o) -> (i,f,o,g) consistently across both
    weight matrices and the bias, splits the decoder W_ih into emb/context
    parts, and lane-pads the fc projection to a multiple of 128.
    """
    H = params['emb_src'].shape[1]
    V = params['fc_w_t'].shape[1]

    def reorder(w):  # gate blocks along the last dim: (i,f,g,o) -> (i,f,o,g)
        return jnp.concatenate(
            [w[..., 0:2 * H], w[..., 3 * H:4 * H], w[..., 2 * H:3 * H]], axis=-1)

    Vp = ((V + 127) // 128) * 128
    return dict(
        emb_src=params['emb_src'],
        emb_trg=params['emb_trg'],
        enc_wx=reorder(params['enc_wih_t']),
        enc_wh=reorder(params['enc_whh_t']),
        enc_b=reorder(params['enc_b']),
        dec_wx=reorder(params['dec_wih_t'][:H]),          # acts on emb_t
        dec_wc=reorder(params['dec_wih_t'][H:2 * H]),     # acts on constant ctx
        dec_wh=reorder(params['dec_whh_t']),
        dec_b=reorder(params['dec_b']),
        fc_w=jnp.pad(params['fc_w_t'], ((0, 0), (0, Vp - V))),
        fc_b=jnp.pad(params['fc_b'], ((0, 0), (0, Vp - V))),
    )


# ------------------------------ forward (glue) ---------------------------------

@partial(jax.jit, static_argnames=('trg_vocab',))
def seq2seq_forward(prepared, src, trg, trg_vocab):
    H = prepared['emb_src'].shape[1]
    B, S_src = src.shape
    _, S_trg = trg.shape
    Vp = prepared['fc_w'].shape[1]
    Mp = ((S_trg * B + 7) // 8) * 8                       # sublane-aligned fc rows

    # Embedding gathers (dropout = identity in eval), time-major flattened.
    x_src = jnp.transpose(prepared['emb_src'][src], (1, 0, 2)).reshape(S_src * B, H)
    x_trg = jnp.transpose(prepared['emb_trg'][trg], (1, 0, 2)).reshape(S_trg * B, H)

    out = pl.pallas_call(
        make_seq2seq_kernel(B, S_src, S_trg, H, Mp),
        out_shape=jax.ShapeDtypeStruct((Mp, Vp), jnp.float32),
    )(x_src, x_trg,
      prepared['enc_wx'], prepared['enc_wh'], prepared['enc_b'],
      prepared['dec_wx'], prepared['dec_wc'], prepared['dec_wh'], prepared['dec_b'],
      prepared['fc_w'], prepared['fc_b'])

    logits = out[:S_trg * B, :trg_vocab].reshape(S_trg, B, trg_vocab)
    return jnp.transpose(logits, (1, 0, 2))               # (B, S_trg, V)


# --------------------------- pure-JAX reference --------------------------------

def _ref_lstm_cell(x_t, h, c, wih_t, whh_t, b):
    gates = jnp.dot(x_t, wih_t) + jnp.dot(h, whh_t) + b
    H = h.shape[-1]
    i = jax.nn.sigmoid(gates[:, 0:H])
    f = jax.nn.sigmoid(gates[:, H:2 * H])
    g = jnp.tanh(gates[:, 2 * H:3 * H])
    o = jax.nn.sigmoid(gates[:, 3 * H:4 * H])
    c_new = f * c + i * g
    return o * jnp.tanh(c_new), c_new


def _ref_lstm(x_seq, h0, c0, wih_t, whh_t, b):
    def step(carry, x_t):
        h, c = carry
        h_new, c_new = _ref_lstm_cell(x_t, h, c, wih_t, whh_t, b)
        return (h_new, c_new), h_new
    (h, c), outs = lax.scan(step, (h0, c0), jnp.transpose(x_seq, (1, 0, 2)))
    return jnp.transpose(outs, (1, 0, 2)), h, c


def reference_forward(params, src, trg):
    B = src.shape[0]
    H = params['emb_src'].shape[1]
    x_src = params['emb_src'][src]
    z = jnp.zeros((B, H), jnp.float32)
    enc_out, hidden, cell = _ref_lstm(x_src, z, z, params['enc_wih_t'],
                                      params['enc_whh_t'], params['enc_b'])
    score = jnp.einsum('bsh,bh->bs', enc_out, hidden)
    weight = jax.nn.softmax(score[..., None], axis=2)     # softmax over size-1 dim
    context = jnp.einsum('bso,bsh->bh', weight, enc_out)
    x_trg = params['emb_trg'][trg]
    S_trg = trg.shape[1]
    ctx_rep = jnp.broadcast_to(context[:, None, :], (B, S_trg, H))
    x_cat = jnp.concatenate([x_trg, ctx_rep], axis=-1)
    dec_out, _, _ = _ref_lstm(x_cat, hidden, cell, params['dec_wih_t'],
                              params['dec_whh_t'], params['dec_b'])
    return jnp.einsum('bsh,hv->bsv', dec_out, params['fc_w_t']) + params['fc_b'][0]


# ----------------------------------- main --------------------------------------

if __name__ == "__main__":
    B, S_src, S_trg, H = 2, 8, 6, 32
    src_vocab, trg_vocab = 50, 48

    params = init_params(jax.random.PRNGKey(0), src_vocab, trg_vocab, H)
    prepared = prepare_params(params)                     # one-time weight prep

    k1, k2 = jax.random.split(jax.random.PRNGKey(0), 2)
    src = jax.random.randint(k1, (B, S_src), 0, src_vocab, dtype=jnp.int32)
    trg = jax.random.randint(k2, (B, S_trg), 0, trg_vocab, dtype=jnp.int32)

    out = seq2seq_forward(prepared, src, trg, trg_vocab)
    out = jax.block_until_ready(out)

    assert out.shape == (B, S_trg, trg_vocab), out.shape
    ref = reference_forward(params, src, trg)
    assert jnp.allclose(out, ref, atol=1e-2, rtol=1e-2), \
        float(jnp.max(jnp.abs(out - ref)))

    # TODO(synk): dropout layers are eval-mode identities; training-mode dropout
    # RNG is not reproduced.
    print("KERNEL_OK")
</pallas_src>

<mosaic_0001>
module attributes {stable_mosaic.version = 11 : i64} {
  func.func @kernel(%arg0: memref<16x32xf32, #tpu.memory_space<vmem>>, %arg1: memref<12x32xf32, #tpu.memory_space<vmem>>, %arg2: memref<32x128xf32, #tpu.memory_space<vmem>>, %arg3: memref<32x128xf32, #tpu.memory_space<vmem>>, %arg4: memref<1x128xf32, #tpu.memory_space<vmem>>, %arg5: memref<32x128xf32, #tpu.memory_space<vmem>>, %arg6: memref<32x128xf32, #tpu.memory_space<vmem>>, %arg7: memref<32x128xf32, #tpu.memory_space<vmem>>, %arg8: memref<1x128xf32, #tpu.memory_space<vmem>>, %arg9: memref<32x128xf32, #tpu.memory_space<vmem>>, %arg10: memref<1x128xf32, #tpu.memory_space<vmem>>, %arg11: memref<16x128xf32, #tpu.memory_space<vmem>>) attributes {dimension_semantics = [], scalar_prefetch = 0 : i64, scratch_operands = 0 : i64, tpu.core_type = #tpu.core_type<tc>} {
    %c0 = arith.constant 0 : index
    %c0_0 = arith.constant 0 : index
    %0 = vector.load %arg0[%c0, %c0_0] : memref<16x32xf32, #tpu.memory_space<vmem>>, vector<16x32xf32>
    %c0_1 = arith.constant 0 : index
    %c0_2 = arith.constant 0 : index
    %1 = vector.load %arg2[%c0_1, %c0_2] : memref<32x128xf32, #tpu.memory_space<vmem>>, vector<32x128xf32>
    %cst = arith.constant dense<0.000000e+00> : vector<16x128xf32>
    %2 = tpu.matmul %0, %1, %cst {dimension_numbers = #tpu.dot_dimension_numbers<[1], [0], [0], [1], [0, 0, 1, 1], [], []>} : vector<16x32xf32>, vector<32x128xf32>, vector<16x128xf32> -> vector<16x128xf32>
    %c0_3 = arith.constant 0 : index
    %c0_4 = arith.constant 0 : index
    %3 = vector.load %arg3[%c0_3, %c0_4] : memref<32x128xf32, #tpu.memory_space<vmem>>, vector<32x128xf32>
    %c0_5 = arith.constant 0 : index
    %c0_6 = arith.constant 0 : index
    %4 = vector.load %arg4[%c0_5, %c0_6] : memref<1x128xf32, #tpu.memory_space<vmem>>, vector<1x128xf32>
    %5 = vector.shape_cast %4 : vector<1x128xf32> to vector<1x128xf32>
    %6 = vector.broadcast %5 : vector<1x128xf32> to vector<2x128xf32>
    %cst_7 = arith.constant 0.000000e+00 : f32
    %7 = vector.broadcast %cst_7 : f32 to vector<2x32xf32>
    %cst_8 = arith.constant 0.000000e+00 : f32
    %8 = vector.broadcast %cst_8 : f32 to vector<2x32xf32>
    %cst_9 = arith.constant 0.000000e+00 : f32
    %9 = vector.broadcast %cst_9 : f32 to vector<2x32xf32>
    %10 = vector.extract_strided_slice %2 {offsets = [0, 0], sizes = [2, 128], strides = [1, 1]} : vector<16x128xf32> to vector<2x128xf32>
    %cst_10 = arith.constant dense<0.000000e+00> : vector<2x128xf32>
    %11 = tpu.matmul %7, %3, %cst_10 {dimension_numbers = #tpu.dot_dimension_numbers<[1], [0], [0], [1], [0, 0, 1, 1], [], []>} : vector<2x32xf32>, vector<32x128xf32>, vector<2x128xf32> -> vector<2x128xf32>
    %12 = arith.addf %10, %11 : vector<2x128xf32>
    %13 = arith.addf %12, %6 : vector<2x128xf32>
    %14 = vector.extract_strided_slice %13 {offsets = [0, 0], sizes = [2, 96], strides = [1, 1]} : vector<2x128xf32> to vector<2x96xf32>
    %15 = arith.negf %14 : vector<2x96xf32>
    %16 = math.exp %15 : vector<2x96xf32>
    %cst_11 = arith.constant 1.000000e+00 : f32
    %17 = vector.broadcast %cst_11 : f32 to vector<2x96xf32>
    %18 = arith.addf %17, %16 : vector<2x96xf32>
    %19 = arith.divf %17, %18 : vector<2x96xf32>
    %20 = vector.extract_strided_slice %19 {offsets = [0, 0], sizes = [2, 32], strides = [1, 1]} : vector<2x96xf32> to vector<2x32xf32>
    %21 = vector.extract_strided_slice %19 {offsets = [0, 32], sizes = [2, 32], strides = [1, 1]} : vector<2x96xf32> to vector<2x32xf32>
    %22 = vector.extract_strided_slice %19 {offsets = [0, 64], sizes = [2, 32], strides = [1, 1]} : vector<2x96xf32> to vector<2x32xf32>
    %23 = vector.extract_strided_slice %13 {offsets = [0, 96], sizes = [2, 32], strides = [1, 1]} : vector<2x128xf32> to vector<2x32xf32>
    %24 = math.tanh %23 : vector<2x32xf32>
    %25 = arith.mulf %21, %8 : vector<2x32xf32>
    %26 = arith.mulf %20, %24 : vector<2x32xf32>
    %27 = arith.addf %25, %26 : vector<2x32xf32>
    %28 = math.tanh %27 : vector<2x32xf32>
    %29 = arith.mulf %22, %28 : vector<2x32xf32>
    %30 = arith.addf %9, %29 : vector<2x32xf32>
    %31 = vector.extract_strided_slice %2 {offsets = [2, 0], sizes = [2, 128], strides = [1, 1]} : vector<16x128xf32> to vector<2x128xf32>
    %cst_12 = arith.constant dense<0.000000e+00> : vector<2x128xf32>
    %32 = tpu.matmul %29, %3, %cst_12 {dimension_numbers = #tpu.dot_dimension_numbers<[1], [0], [0], [1], [0, 0, 1, 1], [], []>} : vector<2x32xf32>, vector<32x128xf32>, vector<2x128xf32> -> vector<2x128xf32>
    %33 = arith.addf %31, %32 : vector<2x128xf32>
    %34 = arith.addf %33, %6 : vector<2x128xf32>
    %35 = vector.extract_strided_slice %34 {offsets = [0, 0], sizes = [2, 96], strides = [1, 1]} : vector<2x128xf32> to vector<2x96xf32>
    %36 = arith.negf %35 : vector<2x96xf32>
    %37 = math.exp %36 : vector<2x96xf32>
    %cst_13 = arith.constant 1.000000e+00 : f32
    %38 = vector.broadcast %cst_13 : f32 to vector<2x96xf32>
    %39 = arith.addf %38, %37 : vector<2x96xf32>
    %40 = arith.divf %38, %39 : vector<2x96xf32>
    %41 = vector.extract_strided_slice %40 {offsets = [0, 0], sizes = [2, 32], strides = [1, 1]} : vector<2x96xf32> to vector<2x32xf32>
    %42 = vector.extract_strided_slice %40 {offsets = [0, 32], sizes = [2, 32], strides = [1, 1]} : vector<2x96xf32> to vector<2x32xf32>
    %43 = vector.extract_strided_slice %40 {offsets = [0, 64], sizes = [2, 32], strides = [1, 1]} : vector<2x96xf32> to vector<2x32xf32>
    %44 = vector.extract_strided_slice %34 {offsets = [0, 96], sizes = [2, 32], strides = [1, 1]} : vector<2x128xf32> to vector<2x32xf32>
    %45 = math.tanh %44 : vector<2x32xf32>
    %46 = arith.mulf %42, %27 : vector<2x32xf32>
    %47 = arith.mulf %41, %45 : vector<2x32xf32>
    %48 = arith.addf %46, %47 : vector<2x32xf32>
    %49 = math.tanh %48 : vector<2x32xf32>
    %50 = arith.mulf %43, %49 : vector<2x32xf32>
    %51 = arith.addf %30, %50 : vector<2x32xf32>
    %52 = vector.extract_strided_slice %2 {offsets = [4, 0], sizes = [2, 128], strides = [1, 1]} : vector<16x128xf32> to vector<2x128xf32>
    %cst_14 = arith.constant dense<0.000000e+00> : vector<2x128xf32>
    %53 = tpu.matmul %50, %3, %cst_14 {dimension_numbers = #tpu.dot_dimension_numbers<[1], [0], [0], [1], [0, 0, 1, 1], [], []>} : vector<2x32xf32>, vector<32x128xf32>, vector<2x128xf32> -> vector<2x128xf32>
    %54 = arith.addf %52, %53 : vector<2x128xf32>
    %55 = arith.addf %54, %6 : vector<2x128xf32>
    %56 = vector.extract_strided_slice %55 {offsets = [0, 0], sizes = [2, 96], strides = [1, 1]} : vector<2x128xf32> to vector<2x96xf32>
    %57 = arith.negf %56 : vector<2x96xf32>
    %58 = math.exp %57 : vector<2x96xf32>
    %cst_15 = arith.constant 1.000000e+00 : f32
    %59 = vector.broadcast %cst_15 : f32 to vector<2x96xf32>
    %60 = arith.addf %59, %58 : vector<2x96xf32>
    %61 = arith.divf %59, %60 : vector<2x96xf32>
    %62 = vector.extract_strided_slice %61 {offsets = [0, 0], sizes = [2, 32], strides = [1, 1]} : vector<2x96xf32> to vector<2x32xf32>
    %63 = vector.extract_strided_slice %61 {offsets = [0, 32], sizes = [2, 32], strides = [1, 1]} : vector<2x96xf32> to vector<2x32xf32>
    %64 = vector.extract_strided_slice %61 {offsets = [0, 64], sizes = [2, 32], strides = [1, 1]} : vector<2x96xf32> to vector<2x32xf32>
    %65 = vector.extract_strided_slice %55 {offsets = [0, 96], sizes = [2, 32], strides = [1, 1]} : vector<2x128xf32> to vector<2x32xf32>
    %66 = math.tanh %65 : vector<2x32xf32>
    %67 = arith.mulf %63, %48 : vector<2x32xf32>
    %68 = arith.mulf %62, %66 : vector<2x32xf32>
    %69 = arith.addf %67, %68 : vector<2x32xf32>
    %70 = math.tanh %69 : vector<2x32xf32>
    %71 = arith.mulf %64, %70 : vector<2x32xf32>
    %72 = arith.addf %51, %71 : vector<2x32xf32>
    %73 = vector.extract_strided_slice %2 {offsets = [6, 0], sizes = [2, 128], strides = [1, 1]} : vector<16x128xf32> to vector<2x128xf32>
    %cst_16 = arith.constant dense<0.000000e+00> : vector<2x128xf32>
    %74 = tpu.matmul %71, %3, %cst_16 {dimension_numbers = #tpu.dot_dimension_numbers<[1], [0], [0], [1], [0, 0, 1, 1], [], []>} : vector<2x32xf32>, vector<32x128xf32>, vector<2x128xf32> -> vector<2x128xf32>
    %75 = arith.addf %73, %74 : vector<2x128xf32>
    %76 = arith.addf %75, %6 : vector<2x128xf32>
    %77 = vector.extract_strided_slice %76 {offsets = [0, 0], sizes = [2, 96], strides = [1, 1]} : vector<2x128xf32> to vector<2x96xf32>
    %78 = arith.negf %77 : vector<2x96xf32>
    %79 = math.exp %78 : vector<2x96xf32>
    %cst_17 = arith.constant 1.000000e+00 : f32
    %80 = vector.broadcast %cst_17 : f32 to vector<2x96xf32>
    %81 = arith.addf %80, %79 : vector<2x96xf32>
    %82 = arith.divf %80, %81 : vector<2x96xf32>
    %83 = vector.extract_strided_slice %82 {offsets = [0, 0], sizes = [2, 32], strides = [1, 1]} : vector<2x96xf32> to vector<2x32xf32>
    %84 = vector.extract_strided_slice %82 {offsets = [0, 32], sizes = [2, 32], strides = [1, 1]} : vector<2x96xf32> to vector<2x32xf32>
    %85 = vector.extract_strided_slice %82 {offsets = [0, 64], sizes = [2, 32], strides = [1, 1]} : vector<2x96xf32> to vector<2x32xf32>
    %86 = vector.extract_strided_slice %76 {offsets = [0, 96], sizes = [2, 32], strides = [1, 1]} : vector<2x128xf32> to vector<2x32xf32>
    %87 = math.tanh %86 : vector<2x32xf32>
    %88 = arith.mulf %84, %69 : vector<2x32xf32>
    %89 = arith.mulf %83, %87 : vector<2x32xf32>
    %90 = arith.addf %88, %89 : vector<2x32xf32>
    %91 = math.tanh %90 : vector<2x32xf32>
    %92 = arith.mulf %85, %91 : vector<2x32xf32>
    %93 = arith.addf %72, %92 : vector<2x32xf32>
    %94 = vector.extract_strided_slice %2 {offsets = [8, 0], sizes = [2, 128], strides = [1, 1]} : vector<16x128xf32> to vector<2x128xf32>
    %cst_18 = arith.constant dense<0.000000e+00> : vector<2x128xf32>
    %95 = tpu.matmul %92, %3, %cst_18 {dimension_numbers = #tpu.dot_dimension_numbers<[1], [0], [0], [1], [0, 0, 1, 1], [], []>} : vector<2x32xf32>, vector<32x128xf32>, vector<2x128xf32> -> vector<2x128xf32>
    %96 = arith.addf %94, %95 : vector<2x128xf32>
    %97 = arith.addf %96, %6 : vector<2x128xf32>
    %98 = vector.extract_strided_slice %97 {offsets = [0, 0], sizes = [2, 96], strides = [1, 1]} : vector<2x128xf32> to vector<2x96xf32>
    %99 = arith.negf %98 : vector<2x96xf32>
    %100 = math.exp %99 : vector<2x96xf32>
    %cst_19 = arith.constant 1.000000e+00 : f32
    %101 = vector.broadcast %cst_19 : f32 to vector<2x96xf32>
    %102 = arith.addf %101, %100 : vector<2x96xf32>
    %103 = arith.divf %101, %102 : vector<2x96xf32>
    %104 = vector.extract_strided_slice %103 {offsets = [0, 0], sizes = [2, 32], strides = [1, 1]} : vector<2x96xf32> to vector<2x32xf32>
    %105 = vector.extract_strided_slice %103 {offsets = [0, 32], sizes = [2, 32], strides = [1, 1]} : vector<2x96xf32> to vector<2x32xf32>
    %106 = vector.extract_strided_slice %103 {offsets = [0, 64], sizes = [2, 32], strides = [1, 1]} : vector<2x96xf32> to vector<2x32xf32>
    %107 = vector.extract_strided_slice %97 {offsets = [0, 96], sizes = [2, 32], strides = [1, 1]} : vector<2x128xf32> to vector<2x32xf32>
    %108 = math.tanh %107 : vector<2x32xf32>
    %109 = arith.mulf %105, %90 : vector<2x32xf32>
    %110 = arith.mulf %104, %108 : vector<2x32xf32>
    %111 = arith.addf %109, %110 : vector<2x32xf32>
    %112 = math.tanh %111 : vector<2x32xf32>
    %113 = arith.mulf %106, %112 : vector<2x32xf32>
    %114 = arith.addf %93, %113 : vector<2x32xf32>
    %115 = vector.extract_strided_slice %2 {offsets = [10, 0], sizes = [2, 128], strides = [1, 1]} : vector<16x128xf32> to vector<2x128xf32>
    %cst_20 = arith.constant dense<0.000000e+00> : vector<2x128xf32>
    %116 = tpu.matmul %113, %3, %cst_20 {dimension_numbers = #tpu.dot_dimension_numbers<[1], [0], [0], [1], [0, 0, 1, 1], [], []>} : vector<2x32xf32>, vector<32x128xf32>, vector<2x128xf32> -> vector<2x128xf32>
    %117 = arith.addf %115, %116 : vector<2x128xf32>
    %118 = arith.addf %117, %6 : vector<2x128xf32>
    %119 = vector.extract_strided_slice %118 {offsets = [0, 0], sizes = [2, 96], strides = [1, 1]} : vector<2x128xf32> to vector<2x96xf32>
    %120 = arith.negf %119 : vector<2x96xf32>
    %121 = math.exp %120 : vector<2x96xf32>
    %cst_21 = arith.constant 1.000000e+00 : f32
    %122 = vector.broadcast %cst_21 : f32 to vector<2x96xf32>
    %123 = arith.addf %122, %121 : vector<2x96xf32>
    %124 = arith.divf %122, %123 : vector<2x96xf32>
    %125 = vector.extract_strided_slice %124 {offsets = [0, 0], sizes = [2, 32], strides = [1, 1]} : vector<2x96xf32> to vector<2x32xf32>
    %126 = vector.extract_strided_slice %124 {offsets = [0, 32], sizes = [2, 32], strides = [1, 1]} : vector<2x96xf32> to vector<2x32xf32>
    %127 = vector.extract_strided_slice %124 {offsets = [0, 64], sizes = [2, 32], strides = [1, 1]} : vector<2x96xf32> to vector<2x32xf32>
    %128 = vector.extract_strided_slice %118 {offsets = [0, 96], sizes = [2, 32], strides = [1, 1]} : vector<2x128xf32> to vector<2x32xf32>
    %129 = math.tanh %128 : vector<2x32xf32>
    %130 = arith.mulf %126, %111 : vector<2x32xf32>
    %131 = arith.mulf %125, %129 : vector<2x32xf32>
    %132 = arith.addf %130, %131 : vector<2x32xf32>
    %133 = math.tanh %132 : vector<2x32xf32>
    %134 = arith.mulf %127, %133 : vector<2x32xf32>
    %135 = arith.addf %114, %134 : vector<2x32xf32>
    %136 = vector.extract_strided_slice %2 {offsets = [12, 0], sizes = [2, 128], strides = [1, 1]} : vector<16x128xf32> to vector<2x128xf32>
    %cst_22 = arith.constant dense<0.000000e+00> : vector<2x128xf32>
    %137 = tpu.matmul %134, %3, %cst_22 {dimension_numbers = #tpu.dot_dimension_numbers<[1], [0], [0], [1], [0, 0, 1, 1], [], []>} : vector<2x32xf32>, vector<32x128xf32>, vector<2x128xf32> -> vector<2x128xf32>
    %138 = arith.addf %136, %137 : vector<2x128xf32>
    %139 = arith.addf %138, %6 : vector<2x128xf32>
    %140 = vector.extract_strided_slice %139 {offsets = [0, 0], sizes = [2, 96], strides = [1, 1]} : vector<2x128xf32> to vector<2x96xf32>
    %141 = arith.negf %140 : vector<2x96xf32>
    %142 = math.exp %141 : vector<2x96xf32>
    %cst_23 = arith.constant 1.000000e+00 : f32
    %143 = vector.broadcast %cst_23 : f32 to vector<2x96xf32>
    %144 = arith.addf %143, %142 : vector<2x96xf32>
    %145 = arith.divf %143, %144 : vector<2x96xf32>
    %146 = vector.extract_strided_slice %145 {offsets = [0, 0], sizes = [2, 32], strides = [1, 1]} : vector<2x96xf32> to vector<2x32xf32>
    %147 = vector.extract_strided_slice %145 {offsets = [0, 32], sizes = [2, 32], strides = [1, 1]} : vector<2x96xf32> to vector<2x32xf32>
    %148 = vector.extract_strided_slice %145 {offsets = [0, 64], sizes = [2, 32], strides = [1, 1]} : vector<2x96xf32> to vector<2x32xf32>
    %149 = vector.extract_strided_slice %139 {offsets = [0, 96], sizes = [2, 32], strides = [1, 1]} : vector<2x128xf32> to vector<2x32xf32>
    %150 = math.tanh %149 : vector<2x32xf32>
    %151 = arith.mulf %147, %132 : vector<2x32xf32>
    %152 = arith.mulf %146, %150 : vector<2x32xf32>
    %153 = arith.addf %151, %152 : vector<2x32xf32>
    %154 = math.tanh %153 : vector<2x32xf32>
    %155 = arith.mulf %148, %154 : vector<2x32xf32>
    %156 = arith.addf %135, %155 : vector<2x32xf32>
    %157 = vector.extract_strided_slice %2 {offsets = [14, 0], sizes = [2, 128], strides = [1, 1]} : vector<16x128xf32> to vector<2x128xf32>
    %cst_24 = arith.constant dense<0.000000e+00> : vector<2x128xf32>
    %158 = tpu.matmul %155, %3, %cst_24 {dimension_numbers = #tpu.dot_dimension_numbers<[1], [0], [0], [1], [0, 0, 1, 1], [], []>} : vector<2x32xf32>, vector<32x128xf32>, vector<2x128xf32> -> vector<2x128xf32>
    %159 = arith.addf %157, %158 : vector<2x128xf32>
    %160 = arith.addf %159, %6 : vector<2x128xf32>
    %161 = vector.extract_strided_slice %160 {offsets = [0, 0], sizes = [2, 96], strides = [1, 1]} : vector<2x128xf32> to vector<2x96xf32>
    %162 = arith.negf %161 : vector<2x96xf32>
    %163 = math.exp %162 : vector<2x96xf32>
    %cst_25 = arith.constant 1.000000e+00 : f32
    %164 = vector.broadcast %cst_25 : f32 to vector<2x96xf32>
    %165 = arith.addf %164, %163 : vector<2x96xf32>
    %166 = arith.divf %164, %165 : vector<2x96xf32>
    %167 = vector.extract_strided_slice %166 {offsets = [0, 0], sizes = [2, 32], strides = [1, 1]} : vector<2x96xf32> to vector<2x32xf32>
    %168 = vector.extract_strided_slice %166 {offsets = [0, 32], sizes = [2, 32], strides = [1, 1]} : vector<2x96xf32> to vector<2x32xf32>
    %169 = vector.extract_strided_slice %166 {offsets = [0, 64], sizes = [2, 32], strides = [1, 1]} : vector<2x96xf32> to vector<2x32xf32>
    %170 = vector.extract_strided_slice %160 {offsets = [0, 96], sizes = [2, 32], strides = [1, 1]} : vector<2x128xf32> to vector<2x32xf32>
    %171 = math.tanh %170 : vector<2x32xf32>
    %172 = arith.mulf %168, %153 : vector<2x32xf32>
    %173 = arith.mulf %167, %171 : vector<2x32xf32>
    %174 = arith.addf %172, %173 : vector<2x32xf32>
    %175 = math.tanh %174 : vector<2x32xf32>
    %176 = arith.mulf %169, %175 : vector<2x32xf32>
    %177 = arith.addf %156, %176 : vector<2x32xf32>
    %c0_26 = arith.constant 0 : index
    %c0_27 = arith.constant 0 : index
    %178 = vector.load %arg1[%c0_26, %c0_27] : memref<12x32xf32, #tpu.memory_space<vmem>>, vector<12x32xf32>
    %c0_28 = arith.constant 0 : index
    %c0_29 = arith.constant 0 : index
    %179 = vector.load %arg5[%c0_28, %c0_29] : memref<32x128xf32, #tpu.memory_space<vmem>>, vector<32x128xf32>
    %cst_30 = arith.constant dense<0.000000e+00> : vector<12x128xf32>
    %180 = tpu.matmul %178, %179, %cst_30 {dimension_numbers = #tpu.dot_dimension_numbers<[1], [0], [0], [1], [0, 0, 1, 1], [], []>} : vector<12x32xf32>, vector<32x128xf32>, vector<12x128xf32> -> vector<12x128xf32>
    %c0_31 = arith.constant 0 : index
    %c0_32 = arith.constant 0 : index
    %181 = vector.load %arg7[%c0_31, %c0_32] : memref<32x128xf32, #tpu.memory_space<vmem>>, vector<32x128xf32>
    %c0_33 = arith.constant 0 : index
    %c0_34 = arith.constant 0 : index
    %182 = vector.load %arg8[%c0_33, %c0_34] : memref<1x128xf32, #tpu.memory_space<vmem>>, vector<1x128xf32>
    %183 = vector.shape_cast %182 : vector<1x128xf32> to vector<1x128xf32>
    %184 = vector.broadcast %183 : vector<1x128xf32> to vector<2x128xf32>
    %c0_35 = arith.constant 0 : index
    %c0_36 = arith.constant 0 : index
    %185 = vector.load %arg6[%c0_35, %c0_36] : memref<32x128xf32, #tpu.memory_space<vmem>>, vector<32x128xf32>
    %cst_37 = arith.constant dense<0.000000e+00> : vector<2x128xf32>
    %186 = tpu.matmul %177, %185, %cst_37 {dimension_numbers = #tpu.dot_dimension_numbers<[1], [0], [0], [1], [0, 0, 1, 1], [], []>} : vector<2x32xf32>, vector<32x128xf32>, vector<2x128xf32> -> vector<2x128xf32>
    %187 = arith.addf %184, %186 : vector<2x128xf32>
    %188 = vector.extract_strided_slice %180 {offsets = [0, 0], sizes = [2, 128], strides = [1, 1]} : vector<12x128xf32> to vector<2x128xf32>
    %cst_38 = arith.constant dense<0.000000e+00> : vector<2x128xf32>
    %189 = tpu.matmul %176, %181, %cst_38 {dimension_numbers = #tpu.dot_dimension_numbers<[1], [0], [0], [1], [0, 0, 1, 1], [], []>} : vector<2x32xf32>, vector<32x128xf32>, vector<2x128xf32> -> vector<2x128xf32>
    %190 = arith.addf %188, %189 : vector<2x128xf32>
    %191 = arith.addf %190, %187 : vector<2x128xf32>
    %192 = vector.extract_strided_slice %191 {offsets = [0, 0], sizes = [2, 96], strides = [1, 1]} : vector<2x128xf32> to vector<2x96xf32>
    %193 = arith.negf %192 : vector<2x96xf32>
    %194 = math.exp %193 : vector<2x96xf32>
    %cst_39 = arith.constant 1.000000e+00 : f32
    %195 = vector.broadcast %cst_39 : f32 to vector<2x96xf32>
    %196 = arith.addf %195, %194 : vector<2x96xf32>
    %197 = arith.divf %195, %196 : vector<2x96xf32>
    %198 = vector.extract_strided_slice %197 {offsets = [0, 0], sizes = [2, 32], strides = [1, 1]} : vector<2x96xf32> to vector<2x32xf32>
    %199 = vector.extract_strided_slice %197 {offsets = [0, 32], sizes = [2, 32], strides = [1, 1]} : vector<2x96xf32> to vector<2x32xf32>
    %200 = vector.extract_strided_slice %197 {offsets = [0, 64], sizes = [2, 32], strides = [1, 1]} : vector<2x96xf32> to vector<2x32xf32>
    %201 = vector.extract_strided_slice %191 {offsets = [0, 96], sizes = [2, 32], strides = [1, 1]} : vector<2x128xf32> to vector<2x32xf32>
    %202 = math.tanh %201 : vector<2x32xf32>
    %203 = arith.mulf %199, %174 : vector<2x32xf32>
    %204 = arith.mulf %198, %202 : vector<2x32xf32>
    %205 = arith.addf %203, %204 : vector<2x32xf32>
    %206 = math.tanh %205 : vector<2x32xf32>
    %207 = arith.mulf %200, %206 : vector<2x32xf32>
    %208 = vector.extract_strided_slice %180 {offsets = [2, 0], sizes = [2, 128], strides = [1, 1]} : vector<12x128xf32> to vector<2x128xf32>
    %cst_40 = arith.constant dense<0.000000e+00> : vector<2x128xf32>
    %209 = tpu.matmul %207, %181, %cst_40 {dimension_numbers = #tpu.dot_dimension_numbers<[1], [0], [0], [1], [0, 0, 1, 1], [], []>} : vector<2x32xf32>, vector<32x128xf32>, vector<2x128xf32> -> vector<2x128xf32>
    %210 = arith.addf %208, %209 : vector<2x128xf32>
    %211 = arith.addf %210, %187 : vector<2x128xf32>
    %212 = vector.extract_strided_slice %211 {offsets = [0, 0], sizes = [2, 96], strides = [1, 1]} : vector<2x128xf32> to vector<2x96xf32>
    %213 = arith.negf %212 : vector<2x96xf32>
    %214 = math.exp %213 : vector<2x96xf32>
    %cst_41 = arith.constant 1.000000e+00 : f32
    %215 = vector.broadcast %cst_41 : f32 to vector<2x96xf32>
    %216 = arith.addf %215, %214 : vector<2x96xf32>
    %217 = arith.divf %215, %216 : vector<2x96xf32>
    %218 = vector.extract_strided_slice %217 {offsets = [0, 0], sizes = [2, 32], strides = [1, 1]} : vector<2x96xf32> to vector<2x32xf32>
    %219 = vector.extract_strided_slice %217 {offsets = [0, 32], sizes = [2, 32], strides = [1, 1]} : vector<2x96xf32> to vector<2x32xf32>
    %220 = vector.extract_strided_slice %217 {offsets = [0, 64], sizes = [2, 32], strides = [1, 1]} : vector<2x96xf32> to vector<2x32xf32>
    %221 = vector.extract_strided_slice %211 {offsets = [0, 96], sizes = [2, 32], strides = [1, 1]} : vector<2x128xf32> to vector<2x32xf32>
    %222 = math.tanh %221 : vector<2x32xf32>
    %223 = arith.mulf %219, %205 : vector<2x32xf32>
    %224 = arith.mulf %218, %222 : vector<2x32xf32>
    %225 = arith.addf %223, %224 : vector<2x32xf32>
    %226 = math.tanh %225 : vector<2x32xf32>
    %227 = arith.mulf %220, %226 : vector<2x32xf32>
    %228 = vector.extract_strided_slice %180 {offsets = [4, 0], sizes = [2, 128], strides = [1, 1]} : vector<12x128xf32> to vector<2x128xf32>
    %cst_42 = arith.constant dense<0.000000e+00> : vector<2x128xf32>
    %229 = tpu.matmul %227, %181, %cst_42 {dimension_numbers = #tpu.dot_dimension_numbers<[1], [0], [0], [1], [0, 0, 1, 1], [], []>} : vector<2x32xf32>, vector<32x128xf32>, vector<2x128xf32> -> vector<2x128xf32>
    %230 = arith.addf %228, %229 : vector<2x128xf32>
    %231 = arith.addf %230, %187 : vector<2x128xf32>
    %232 = vector.extract_strided_slice %231 {offsets = [0, 0], sizes = [2, 96], strides = [1, 1]} : vector<2x128xf32> to vector<2x96xf32>
    %233 = arith.negf %232 : vector<2x96xf32>
    %234 = math.exp %233 : vector<2x96xf32>
    %cst_43 = arith.constant 1.000000e+00 : f32
    %235 = vector.broadcast %cst_43 : f32 to vector<2x96xf32>
    %236 = arith.addf %235, %234 : vector<2x96xf32>
    %237 = arith.divf %235, %236 : vector<2x96xf32>
    %238 = vector.extract_strided_slice %237 {offsets = [0, 0], sizes = [2, 32], strides = [1, 1]} : vector<2x96xf32> to vector<2x32xf32>
    %239 = vector.extract_strided_slice %237 {offsets = [0, 32], sizes = [2, 32], strides = [1, 1]} : vector<2x96xf32> to vector<2x32xf32>
    %240 = vector.extract_strided_slice %237 {offsets = [0, 64], sizes = [2, 32], strides = [1, 1]} : vector<2x96xf32> to vector<2x32xf32>
    %241 = vector.extract_strided_slice %231 {offsets = [0, 96], sizes = [2, 32], strides = [1, 1]} : vector<2x128xf32> to vector<2x32xf32>
    %242 = math.tanh %241 : vector<2x32xf32>
    %243 = arith.mulf %239, %225 : vector<2x32xf32>
    %244 = arith.mulf %238, %242 : vector<2x32xf32>
    %245 = arith.addf %243, %244 : vector<2x32xf32>
    %246 = math.tanh %245 : vector<2x32xf32>
    %247 = arith.mulf %240, %246 : vector<2x32xf32>
    %248 = vector.extract_strided_slice %180 {offsets = [6, 0], sizes = [2, 128], strides = [1, 1]} : vector<12x128xf32> to vector<2x128xf32>
    %cst_44 = arith.constant dense<0.000000e+00> : vector<2x128xf32>
    %249 = tpu.matmul %247, %181, %cst_44 {dimension_numbers = #tpu.dot_dimension_numbers<[1], [0], [0], [1], [0, 0, 1, 1], [], []>} : vector<2x32xf32>, vector<32x128xf32>, vector<2x128xf32> -> vector<2x128xf32>
    %250 = arith.addf %248, %249 : vector<2x128xf32>
    %251 = arith.addf %250, %187 : vector<2x128xf32>
    %252 = vector.extract_strided_slice %251 {offsets = [0, 0], sizes = [2, 96], strides = [1, 1]} : vector<2x128xf32> to vector<2x96xf32>
    %253 = arith.negf %252 : vector<2x96xf32>
    %254 = math.exp %253 : vector<2x96xf32>
    %cst_45 = arith.constant 1.000000e+00 : f32
    %255 = vector.broadcast %cst_45 : f32 to vector<2x96xf32>
    %256 = arith.addf %255, %254 : vector<2x96xf32>
    %257 = arith.divf %255, %256 : vector<2x96xf32>
    %258 = vector.extract_strided_slice %257 {offsets = [0, 0], sizes = [2, 32], strides = [1, 1]} : vector<2x96xf32> to vector<2x32xf32>
    %259 = vector.extract_strided_slice %257 {offsets = [0, 32], sizes = [2, 32], strides = [1, 1]} : vector<2x96xf32> to vector<2x32xf32>
    %260 = vector.extract_strided_slice %257 {offsets = [0, 64], sizes = [2, 32], strides = [1, 1]} : vector<2x96xf32> to vector<2x32xf32>
    %261 = vector.extract_strided_slice %251 {offsets = [0, 96], sizes = [2, 32], strides = [1, 1]} : vector<2x128xf32> to vector<2x32xf32>
    %262 = math.tanh %261 : vector<2x32xf32>
    %263 = arith.mulf %259, %245 : vector<2x32xf32>
    %264 = arith.mulf %258, %262 : vector<2x32xf32>
    %265 = arith.addf %263, %264 : vector<2x32xf32>
    %266 = math.tanh %265 : vector<2x32xf32>
    %267 = arith.mulf %260, %266 : vector<2x32xf32>
    %268 = vector.extract_strided_slice %180 {offsets = [8, 0], sizes = [2, 128], strides = [1, 1]} : vector<12x128xf32> to vector<2x128xf32>
    %cst_46 = arith.constant dense<0.000000e+00> : vector<2x128xf32>
    %269 = tpu.matmul %267, %181, %cst_46 {dimension_numbers = #tpu.dot_dimension_numbers<[1], [0], [0], [1], [0, 0, 1, 1], [], []>} : vector<2x32xf32>, vector<32x128xf32>, vector<2x128xf32> -> vector<2x128xf32>
    %270 = arith.addf %268, %269 : vector<2x128xf32>
    %271 = arith.addf %270, %187 : vector<2x128xf32>
    %272 = vector.extract_strided_slice %271 {offsets = [0, 0], sizes = [2, 96], strides = [1, 1]} : vector<2x128xf32> to vector<2x96xf32>
    %273 = arith.negf %272 : vector<2x96xf32>
    %274 = math.exp %273 : vector<2x96xf32>
    %cst_47 = arith.constant 1.000000e+00 : f32
    %275 = vector.broadcast %cst_47 : f32 to vector<2x96xf32>
    %276 = arith.addf %275, %274 : vector<2x96xf32>
    %277 = arith.divf %275, %276 : vector<2x96xf32>
    %278 = vector.extract_strided_slice %277 {offsets = [0, 0], sizes = [2, 32], strides = [1, 1]} : vector<2x96xf32> to vector<2x32xf32>
    %279 = vector.extract_strided_slice %277 {offsets = [0, 32], sizes = [2, 32], strides = [1, 1]} : vector<2x96xf32> to vector<2x32xf32>
    %280 = vector.extract_strided_slice %277 {offsets = [0, 64], sizes = [2, 32], strides = [1, 1]} : vector<2x96xf32> to vector<2x32xf32>
    %281 = vector.extract_strided_slice %271 {offsets = [0, 96], sizes = [2, 32], strides = [1, 1]} : vector<2x128xf32> to vector<2x32xf32>
    %282 = math.tanh %281 : vector<2x32xf32>
    %283 = arith.mulf %279, %265 : vector<2x32xf32>
    %284 = arith.mulf %278, %282 : vector<2x32xf32>
    %285 = arith.addf %283, %284 : vector<2x32xf32>
    %286 = math.tanh %285 : vector<2x32xf32>
    %287 = arith.mulf %280, %286 : vector<2x32xf32>
    %288 = vector.extract_strided_slice %180 {offsets = [10, 0], sizes = [2, 128], strides = [1, 1]} : vector<12x128xf32> to vector<2x128xf32>
    %cst_48 = arith.constant dense<0.000000e+00> : vector<2x128xf32>
    %289 = tpu.matmul %287, %181, %cst_48 {dimension_numbers = #tpu.dot_dimension_numbers<[1], [0], [0], [1], [0, 0, 1, 1], [], []>} : vector<2x32xf32>, vector<32x128xf32>, vector<2x128xf32> -> vector<2x128xf32>
    %290 = arith.addf %288, %289 : vector<2x128xf32>
    %291 = arith.addf %290, %187 : vector<2x128xf32>
    %292 = vector.extract_strided_slice %291 {offsets = [0, 0], sizes = [2, 96], strides = [1, 1]} : vector<2x128xf32> to vector<2x96xf32>
    %293 = arith.negf %292 : vector<2x96xf32>
    %294 = math.exp %293 : vector<2x96xf32>
    %cst_49 = arith.constant 1.000000e+00 : f32
    %295 = vector.broadcast %cst_49 : f32 to vector<2x96xf32>
    %296 = arith.addf %295, %294 : vector<2x96xf32>
    %297 = arith.divf %295, %296 : vector<2x96xf32>
    %298 = vector.extract_strided_slice %297 {offsets = [0, 0], sizes = [2, 32], strides = [1, 1]} : vector<2x96xf32> to vector<2x32xf32>
    %299 = vector.extract_strided_slice %297 {offsets = [0, 32], sizes = [2, 32], strides = [1, 1]} : vector<2x96xf32> to vector<2x32xf32>
    %300 = vector.extract_strided_slice %297 {offsets = [0, 64], sizes = [2, 32], strides = [1, 1]} : vector<2x96xf32> to vector<2x32xf32>
    %301 = vector.extract_strided_slice %291 {offsets = [0, 96], sizes = [2, 32], strides = [1, 1]} : vector<2x128xf32> to vector<2x32xf32>
    %302 = math.tanh %301 : vector<2x32xf32>
    %303 = arith.mulf %299, %285 : vector<2x32xf32>
    %304 = arith.mulf %298, %302 : vector<2x32xf32>
    %305 = arith.addf %303, %304 : vector<2x32xf32>
    %306 = math.tanh %305 : vector<2x32xf32>
    %307 = arith.mulf %300, %306 : vector<2x32xf32>
    %cst_50 = arith.constant 0.000000e+00 : f32
    %308 = vector.broadcast %cst_50 : f32 to vector<4x32xf32>
    %309 = tpu.concatenate %207, %227, %247, %267, %287, %307, %308 in 0 : vector<2x32xf32>, vector<2x32xf32>, vector<2x32xf32>, vector<2x32xf32>, vector<2x32xf32>, vector<2x32xf32>, vector<4x32xf32> -> vector<16x32xf32>
    %c0_51 = arith.constant 0 : index
    %c0_52 = arith.constant 0 : index
    %310 = vector.load %arg9[%c0_51, %c0_52] : memref<32x128xf32, #tpu.memory_space<vmem>>, vector<32x128xf32>
    %cst_53 = arith.constant dense<0.000000e+00> : vector<16x128xf32>
    %311 = tpu.matmul %309, %310, %cst_53 {dimension_numbers = #tpu.dot_dimension_numbers<[1], [0], [0], [1], [0, 0, 1, 1], [], []>} : vector<16x32xf32>, vector<32x128xf32>, vector<16x128xf32> -> vector<16x128xf32>
    %c0_54 = arith.constant 0 : index
    %c0_55 = arith.constant 0 : index
    %312 = vector.load %arg10[%c0_54, %c0_55] : memref<1x128xf32, #tpu.memory_space<vmem>>, vector<1x128xf32>
    %313 = vector.broadcast %312 : vector<1x128xf32> to vector<16x128xf32>
    %314 = arith.addf %311, %313 : vector<16x128xf32>
    %c0_56 = arith.constant 0 : index
    %c0_57 = arith.constant 0 : index
    %315 = vector.load %arg11[%c0_56, %c0_57] : memref<16x128xf32, #tpu.memory_space<vmem>>, vector<16x128xf32>
    tpu.vector_store %arg11[%c0_56, %c0_57], %314 {strides = array<i32>} : memref<16x128xf32, #tpu.memory_space<vmem>>, vector<16x128xf32>,
    return
  }
}

</mosaic_0001>

<llo_original>
// kernel: seq2seq_forward.1
$region0: #{seq2seq_forward.1}
  #allocation0 [shape = 'u32[]', space=smem, size = 0x4, offset = 0x4, fixed_abs, tag = 'smem constant byte address 0x4 - core index']
  #allocation1 [shape = 'u32[144,128]{1,0:T(1,128)}', space=vmem, size = 0x12000, scoped, tag = 'internal scratch']
  %s0 = inlined_call_operand.vmem [shape: f32[16,32], index: 0, kind: input, shape index: {}]
  %s1 = inlined_call_operand.vmem [shape: f32[12,32], index: 1, kind: input, shape index: {}]
  %s2 = inlined_call_operand.vmem [shape: f32[32,128], index: 2, kind: input, shape index: {}]
  %s3 = inlined_call_operand.vmem [shape: f32[32,128], index: 3, kind: input, shape index: {}]
  %s4 = inlined_call_operand.vmem [shape: f32[1,128], index: 4, kind: input, shape index: {}]
  %s5 = inlined_call_operand.vmem [shape: f32[32,128], index: 5, kind: input, shape index: {}]
  %s6 = inlined_call_operand.vmem [shape: f32[32,128], index: 6, kind: input, shape index: {}]
  %s7 = inlined_call_operand.vmem [shape: f32[32,128], index: 7, kind: input, shape index: {}]
  %s8 = inlined_call_operand.vmem [shape: f32[1,128], index: 8, kind: input, shape index: {}]
  %s9 = inlined_call_operand.vmem [shape: f32[32,128], index: 9, kind: input, shape index: {}]
  %s10 = inlined_call_operand.vmem [shape: f32[1,128], index: 10, kind: input, shape index: {}]
  %s11 = inlined_call_operand.vmem [shape: f32[16,128], index: 11, kind: output, shape index: {}]
  %s12 = sld [smem:[#allocation0]]
  $region54: #{seq2seq_forward.1} parent=0
    _
  %s14 = ssub.s32 1, %s12
  %s15 = scalar_select 0, %s14, %s12
  // Predicated region
  $region2: #{seq2seq_forward.1} parent=0 // pred_check
    _
  $region3: #{seq2seq_forward.1} parent=0 // pred_check_branch
    %17 = sbr.rel (0) target = $region5
  $region4: #{seq2seq_forward.1} parent=0 // pred_region
    _
  $region5: #{seq2seq_forward.1} parent=0 // pred_fallthru
    _
  // Predicated region
  $region6: #{seq2seq_forward.1} parent=0 // pred_check
    _
  $region7: #{seq2seq_forward.1} parent=0 // pred_check_branch
    %19 = sbr.rel (0) target = $region9
  $region8: #{seq2seq_forward.1} parent=0 // pred_region
    _
  $region9: #{seq2seq_forward.1} parent=0 // pred_fallthru
    _
  // Predicated region
  $region10: #{seq2seq_forward.1} parent=0 // pred_check
    _
  $region11: #{seq2seq_forward.1} parent=0 // pred_check_branch
    %21 = sbr.rel (0) target = $region13
  $region12: #{seq2seq_forward.1} parent=0 // pred_region
    _
  $region13: #{seq2seq_forward.1} parent=0 // pred_fallthru
    _
  // Predicated region
  $region14: #{seq2seq_forward.1} parent=0 // pred_check
    _
  $region15: #{seq2seq_forward.1} parent=0 // pred_check_branch
    %23 = sbr.rel (0) target = $region17
  $region16: #{seq2seq_forward.1} parent=0 // pred_region
    _
  $region17: #{seq2seq_forward.1} parent=0 // pred_fallthru
    _
  // Predicated region
  $region18: #{seq2seq_forward.1} parent=0 // pred_check
    _
  $region19: #{seq2seq_forward.1} parent=0 // pred_check_branch
    %25 = sbr.rel (0) target = $region21
  $region20: #{seq2seq_forward.1} parent=0 // pred_region
    _
  $region21: #{seq2seq_forward.1} parent=0 // pred_fallthru
    _
  // Predicated region
  $region22: #{seq2seq_forward.1} parent=0 // pred_check
    _
  $region23: #{seq2seq_forward.1} parent=0 // pred_check_branch
    %27 = sbr.rel (0) target = $region25
  $region24: #{seq2seq_forward.1} parent=0 // pred_region
    _
  $region25: #{seq2seq_forward.1} parent=0 // pred_fallthru
    _
  // Predicated region
  $region26: #{seq2seq_forward.1} parent=0 // pred_check
    _
  $region27: #{seq2seq_forward.1} parent=0 // pred_check_branch
    %29 = sbr.rel (0) target = $region29
  $region28: #{seq2seq_forward.1} parent=0 // pred_region
    _
  $region29: #{seq2seq_forward.1} parent=0 // pred_fallthru
    _
  // Predicated region
  $region30: #{seq2seq_forward.1} parent=0 // pred_check
    _
  $region31: #{seq2seq_forward.1} parent=0 // pred_check_branch
    %31 = sbr.rel (0) target = $region33
  $region32: #{seq2seq_forward.1} parent=0 // pred_region
    _
  $region33: #{seq2seq_forward.1} parent=0 // pred_fallthru
    _
  // Predicated region
  $region34: #{seq2seq_forward.1} parent=0 // pred_check
    _
  $region35: #{seq2seq_forward.1} parent=0 // pred_check_branch
    %33 = sbr.rel (0) target = $region37
  $region36: #{seq2seq_forward.1} parent=0 // pred_region
    _
  $region37: #{seq2seq_forward.1} parent=0 // pred_fallthru
    _
  // Predicated region
  $region38: #{seq2seq_forward.1} parent=0 // pred_check
    _
  $region39: #{seq2seq_forward.1} parent=0 // pred_check_branch
    %35 = sbr.rel (0) target = $region41
  $region40: #{seq2seq_forward.1} parent=0 // pred_region
    _
  $region41: #{seq2seq_forward.1} parent=0 // pred_fallthru
    _
  // Predicated region
  $region42: #{seq2seq_forward.1} parent=0 // pred_check
    _
  $region43: #{seq2seq_forward.1} parent=0 // pred_check_branch
    %37 = sbr.rel (0) target = $region45
  $region44: #{seq2seq_forward.1} parent=0 // pred_region
    _
  $region45: #{seq2seq_forward.1} parent=0 // pred_fallthru
    _
  %v38 = vld [vmem:[%s0] sm:$0xff]
  %v39 = vld [vmem:[%s0 + $0x8] sm:$0xff]
  %v40 = vld [vmem:[%s2] sm:$0xff]
  %v41 = vld [vmem:[%s2 + $0x8] sm:$0xff]
  %v42 = vld [vmem:[%s2 + $0x10] sm:$0xff]
  %v43 = vld [vmem:[%s2 + $0x18] sm:$0xff]
  %vm44 = vcmask 261120
  %v46 = vsel %vm44, %v38, 0
  %v49 = vsel %vm44, %v39, 0
  %51 = vmatprep.subr.mxu0 0.0
  %52 = vmatpush1.msra.mxu0 %v40
  %53 = vmatprep.subr.mxu0 0.0
  %54 = vmatpush1.msra.mxu0 %v41
  %55 = vmatprep.subr.mxu0 0.0
  %56 = vmatpush1.msra.mxu0 %v42
  %57 = vmatprep.subr.mxu0 0.0
  %58 = vmatpush1.msra.mxu0 %v43
  %59 = vmatprep.subr.mxu0 0.0
  %60 = vmatpush1.msra.mxu0 0.0
  %61 = vmatprep.subr.mxu0 0.0
  %62 = vmatpush1.msra.mxu0 0.0
  %63 = vmatprep.subr.mxu0 0.0
  %64 = vmatpush1.msra.mxu0 0.0
  %65 = vmatprep.subr.mxu0 0.0
  %66 = vmatpush1.msra.mxu0 0.0
  %67 = vmatprep.subr.mxu0 0.0
  %68 = vmatpush1.msra.mxu0 0.0
  %69 = vmatprep.subr.mxu0 0.0
  %70 = vmatpush1.msra.mxu0 0.0
  %71 = vmatprep.subr.mxu0 0.0
  %72 = vmatpush1.msra.mxu0 0.0
  %73 = vmatprep.subr.mxu0 0.0
  %74 = vmatpush1.msra.mxu0 0.0
  %75 = vmatprep.subr.mxu0 0.0
  %76 = vmatpush1.msra.mxu0 0.0
  %77 = vmatprep.subr.mxu0 0.0
  %78 = vmatpush1.msra.mxu0 0.0
  %79 = vmatprep.subr.mxu0 0.0
  %80 = vmatpush1.msra.mxu0 0.0
  %81 = vmatprep.subr.mxu0 0.0
  %82 = vmatpush1.msra.mxu0 0.0
  %83 = vmatprep.subr.mxu0 0.0
  %84 = vmatpush1.msra.mxu0 0.0
  %85 = vmatprep.subr.mxu0 0.0
  %86 = vmatpush1.msra.mxu0 0.0
  %87 = vmatprep.subr.mxu0 0.0
  %88 = vmatpush1.msra.mxu0 0.0
  %89 = vmatprep.subr.mxu0 0.0
  %90 = vmatpush1.msra.mxu0 0.0
  %91 = vmatprep.subr.mxu0 0.0
  %92 = vmatpush1.msra.mxu0 0.0
  %93 = vmatprep.subr.mxu0 0.0
  %94 = vmatpush1.msra.mxu0 0.0
  %95 = vmatprep.subr.mxu0 0.0
  %96 = vmatpush1.msra.mxu0 0.0
  %97 = vmatprep.subr.mxu0 0.0
  %98 = vmatpush1.msra.mxu0 0.0
  %99 = vmatprep.subr.mxu0 0.0
  %100 = vmatpush1.msra.mxu0 0.0
  %101 = vmatprep.subr.mxu0 0.0
  %102 = vmatpush1.msra.mxu0 0.0
  %103 = vmatprep.subr.mxu0 0.0
  %104 = vmatpush1.msra.mxu0 0.0
  %105 = vmatprep.subr.mxu0 0.0
  %106 = vmatpush1.msra.mxu0 0.0
  %107 = vmatprep.subr.mxu0 0.0
  %108 = vmatpush1.msra.mxu0 0.0
  %109 = vmatprep.subr.mxu0 0.0
  %110 = vmatpush1.msra.mxu0 0.0
  %111 = vmatprep.subr.mxu0 0.0
  %112 = vmatpush1.msra.mxu0 0.0
  %113 = vmatprep.subr.mxu0 0.0
  %114 = vmatpush1.msra.mxu0 0.0
  %115 = vmatprep.mubr.f32.mxu0 0.0
  %116 = vmatmul.mubr.f32.gmra.mrb[0].mxu0 %v46
  %v117 = vpop.f32.mrb[0].mxu0
  %v118 = vadd.f32 0.0, %v117
  %v119 = vpop.f32.mrb[0].mxu0
  %120 = vmatprep.mubr.f32.mxu0 0.0
  %121 = vmatmul.mubr.f32.gmra.mrb[0].mxu0 %v49
  %v122 = vpop.f32.mrb[0].mxu0
  %v123 = vadd.f32 0.0, %v122
  %v124 = vpop.f32.mrb[0].mxu0
  %125 = vdwg.mxu0
  %v126 = vld [vmem:[%s3] sm:$0xff]
  %v127 = vld [vmem:[%s3 + $0x8] sm:$0xff]
  %v128 = vld [vmem:[%s3 + $0x10] sm:$0xff]
  %v129 = vld [vmem:[%s3 + $0x18] sm:$0xff]
  %v130 = vld [vmem:[%s4] sm:$0x1]
  %v132 = vlaneseq
  %v133 = vshrl.u32 %v132, 7
  %v134 = vsub.s32 0, %v133
  %v135 = vrot.slane %v130, %v134
  %v138 = vsel %vm44, 0.0, 0
  %140 = vmatprep.subr.mxu0 0.0
  %141 = vmatpush1.msra.mxu0 %v126
  %142 = vmatprep.subr.mxu0 0.0
  %143 = vmatpush1.msra.mxu0 %v127
  %144 = vmatprep.subr.mxu0 0.0
  %145 = vmatpush1.msra.mxu0 %v128
  %146 = vmatprep.subr.mxu0 0.0
  %147 = vmatpush1.msra.mxu0 %v129
  %148 = vmatprep.subr.mxu0 0.0
  %149 = vmatpush1.msra.mxu0 0.0
  %150 = vmatprep.subr.mxu0 0.0
  %151 = vmatpush1.msra.mxu0 0.0
  %152 = vmatprep.subr.mxu0 0.0
  %153 = vmatpush1.msra.mxu0 0.0
  %154 = vmatprep.subr.mxu0 0.0
  %155 = vmatpush1.msra.mxu0 0.0
  %156 = vmatprep.subr.mxu0 0.0
  %157 = vmatpush1.msra.mxu0 0.0
  %158 = vmatprep.subr.mxu0 0.0
  %159 = vmatpush1.msra.mxu0 0.0
  %160 = vmatprep.subr.mxu0 0.0
  %161 = vmatpush1.msra.mxu0 0.0
  %162 = vmatprep.subr.mxu0 0.0
  %163 = vmatpush1.msra.mxu0 0.0
  %164 = vmatprep.subr.mxu0 0.0
  %165 = vmatpush1.msra.mxu0 0.0
  %166 = vmatprep.subr.mxu0 0.0
  %167 = vmatpush1.msra.mxu0 0.0
  %168 = vmatprep.subr.mxu0 0.0
  %169 = vmatpush1.msra.mxu0 0.0
  %170 = vmatprep.subr.mxu0 0.0
  %171 = vmatpush1.msra.mxu0 0.0
  %172 = vmatprep.subr.mxu0 0.0
  %173 = vmatpush1.msra.mxu0 0.0
  %174 = vmatprep.subr.mxu0 0.0
  %175 = vmatpush1.msra.mxu0 0.0
  %176 = vmatprep.subr.mxu0 0.0
  %177 = vmatpush1.msra.mxu0 0.0
  %178 = vmatprep.subr.mxu0 0.0
  %179 = vmatpush1.msra.mxu0 0.0
  %180 = vmatprep.subr.mxu0 0.0
  %181 = vmatpush1.msra.mxu0 0.0
  %182 = vmatprep.subr.mxu0 0.0
  %183 = vmatpush1.msra.mxu0 0.0
  %184 = vmatprep.subr.mxu0 0.0
  %185 = vmatpush1.msra.mxu0 0.0
  %186 = vmatprep.subr.mxu0 0.0
  %187 = vmatpush1.msra.mxu0 0.0
  %188 = vmatprep.subr.mxu0 0.0
  %189 = vmatpush1.msra.mxu0 0.0
  %190 = vmatprep.subr.mxu0 0.0
  %191 = vmatpush1.msra.mxu0 0.0
  %192 = vmatprep.subr.mxu0 0.0
  %193 = vmatpush1.msra.mxu0 0.0
  %194 = vmatprep.subr.mxu0 0.0
  %195 = vmatpush1.msra.mxu0 0.0
  %196 = vmatprep.subr.mxu0 0.0
  %197 = vmatpush1.msra.mxu0 0.0
  %198 = vmatprep.subr.mxu0 0.0
  %199 = vmatpush1.msra.mxu0 0.0
  %200 = vmatprep.subr.mxu0 0.0
  %201 = vmatpush1.msra.mxu0 0.0
  %202 = vmatprep.subr.mxu0 0.0
  %203 = vmatpush1.msra.mxu0 0.0
  %204 = vmatprep.mubr.f32.mxu0 0.0
  %205 = vmatmul.mubr.f32.gmra.mrb[0].mxu0 %v138
  %v206 = vpop.f32.mrb[0].mxu0
  %v207 = vadd.f32 0.0, %v206
  %v208 = vpop.f32.mrb[0].mxu0
  %209 = vdwg.mxu0
  %v210 = vadd.f32 %v118, %v207
  %v211 = vadd.f32 %v210, %v135
  %v212 = vxor.u32 %v211, 2147483648
  %v213 = vmul.f32 %v212, 1.442695
  %v214 = vpow.pop %v213
  %v215 = vadd.f32 %v214, 1.0
  %v216 = vrcp.pop %v215
  %v217 = vmul.f32 1.0, %v216
  %v218 = vtanh.pop %v211
  %v219 = vmul.f32 %v217, 0.0
  %221 = vrot.lane.b32.xlu0 %v218, 32
  %v222 = vpop.permute.xlu0 %221
  %v224 = vmul.f32 %v217, %v222
  %226 = vrot.lane.b32.xlu0 %v224, 32
  %v227 = vpop.permute.xlu0 %226
  %v229 = vadd.f32 %v219, %v227
  %v230 = vtanh.pop %v229
  %232 = vrot.lane.b32.xlu0 %v230, 32
  %v233 = vpop.permute.xlu0 %232
  %v235 = vmul.f32 %v217, %v233
  %v236 = vadd.f32 %v235, 0.0
  %238 = vrot.lane.b32.xlu0 %v235, 64
  %v239 = vpop.permute.xlu0 %238
  %v240 = vsel %vm44, %v239, 0
  %242 = vmatprep.subr.mxu0 0.0
  %243 = vmatpush1.msra.mxu0 %v126
  %244 = vmatprep.subr.mxu0 0.0
  %245 = vmatpush1.msra.mxu0 %v127
  %246 = vmatprep.subr.mxu0 0.0
  %247 = vmatpush1.msra.mxu0 %v128
  %248 = vmatprep.subr.mxu0 0.0
  %249 = vmatpush1.msra.mxu0 %v129
  %250 = vmatprep.subr.mxu0 0.0
  %251 = vmatpush1.msra.mxu0 0.0
  %252 = vmatprep.subr.mxu0 0.0
  %253 = vmatpush1.msra.mxu0 0.0
  %254 = vmatprep.subr.mxu0 0.0
  %255 = vmatpush1.msra.mxu0 0.0
  %256 = vmatprep.subr.mxu0 0.0
  %257 = vmatpush1.msra.mxu0 0.0
  %258 = vmatprep.subr.mxu0 0.0
  %259 = vmatpush1.msra.mxu0 0.0
  %260 = vmatprep.subr.mxu0 0.0
  %261 = vmatpush1.msra.mxu0 0.0
  %262 = vmatprep.subr.mxu0 0.0
  %263 = vmatpush1.msra.mxu0 0.0
  %264 = vmatprep.subr.mxu0 0.0
  %265 = vmatpush1.msra.mxu0 0.0
  %266 = vmatprep.subr.mxu0 0.0
  %267 = vmatpush1.msra.mxu0 0.0
  %268 = vmatprep.subr.mxu0 0.0
  %269 = vmatpush1.msra.mxu0 0.0
  %270 = vmatprep.subr.mxu0 0.0
  %271 = vmatpush1.msra.mxu0 0.0
  %272 = vmatprep.subr.mxu0 0.0
  %273 = vmatpush1.msra.mxu0 0.0
  %274 = vmatprep.subr.mxu0 0.0
  %275 = vmatpush1.msra.mxu0 0.0
  %276 = vmatprep.subr.mxu0 0.0
  %277 = vmatpush1.msra.mxu0 0.0
  %278 = vmatprep.subr.mxu0 0.0
  %279 = vmatpush1.msra.mxu0 0.0
  %280 = vmatprep.subr.mxu0 0.0
  %281 = vmatpush1.msra.mxu0 0.0
  %282 = vmatprep.subr.mxu0 0.0
  %283 = vmatpush1.msra.mxu0 0.0
  %284 = vmatprep.subr.mxu0 0.0
  %285 = vmatpush1.msra.mxu0 0.0
  %286 = vmatprep.subr.mxu0 0.0
  %287 = vmatpush1.msra.mxu0 0.0
  %288 = vmatprep.subr.mxu0 0.0
  %289 = vmatpush1.msra.mxu0 0.0
  %290 = vmatprep.subr.mxu0 0.0
  %291 = vmatpush1.msra.mxu0 0.0
  %292 = vmatprep.subr.mxu0 0.0
  %293 = vmatpush1.msra.mxu0 0.0
  %294 = vmatprep.subr.mxu0 0.0
  %295 = vmatpush1.msra.mxu0 0.0
  %296 = vmatprep.subr.mxu0 0.0
  %297 = vmatpush1.msra.mxu0 0.0
  %298 = vmatprep.subr.mxu0 0.0
  %299 = vmatpush1.msra.mxu0 0.0
  %300 = vmatprep.subr.mxu0 0.0
  %301 = vmatpush1.msra.mxu0 0.0
  %302 = vmatprep.subr.mxu0 0.0
  %303 = vmatpush1.msra.mxu0 0.0
  %304 = vmatprep.subr.mxu0 0.0
  %305 = vmatpush1.msra.mxu0 0.0
  %306 = vmatprep.mubr.f32.mxu0 0.0
  %307 = vmatmul.mubr.f32.gmra.mrb[0].mxu0 %v240
  %v308 = vpop.f32.mrb[0].mxu0
  %v309 = vadd.f32 0.0, %v308
  %v310 = vpop.f32.mrb[0].mxu0
  %311 = vdwg.mxu0
  %v313 = vrot.slane %v309, 6
  %v315 = vadd.f32 %v118, %v313
  %v316 = vadd.f32 %v315, %v135
  %v317 = vxor.u32 %v316, 2147483648
  %v318 = vmul.f32 %v317, 1.442695
  %v319 = vpow.pop %v318
  %v320 = vadd.f32 %v319, 1.0
  %v321 = vrcp.pop %v320
  %v322 = vmul.f32 1.0, %v321
  %v323 = vtanh.pop %v316
  %v325 = vrot.slane %v229, 6
  %v327 = vmul.f32 %v322, %v325
  %329 = vrot.lane.b32.xlu0 %v323, 32
  %v330 = vpop.permute.xlu0 %329
  %v332 = vmul.f32 %v322, %v330
  %334 = vrot.lane.b32.xlu0 %v332, 32
  %v335 = vpop.permute.xlu0 %334
  %v337 = vadd.f32 %v327, %v335
  %v338 = vtanh.pop %v337
  %340 = vrot.lane.b32.xlu0 %v338, 32
  %v341 = vpop.permute.xlu0 %340
  %v343 = vmul.f32 %v322, %v341
  %v345 = vrot.slane %v343, 2
  %v347 = vadd.f32 %v236, %v345
  %348 = vrot.lane.b32.xlu0 %v345, 64
  %v349 = vpop.permute.xlu0 %348
  %v350 = vsel %vm44, %v349, 0
  %352 = vmatprep.subr.mxu0 0.0
  %353 = vmatpush1.msra.mxu0 %v126
  %354 = vmatprep.subr.mxu0 0.0
  %355 = vmatpush1.msra.mxu0 %v127
  %356 = vmatprep.subr.mxu0 0.0
  %357 = vmatpush1.msra.mxu0 %v128
  %358 = vmatprep.subr.mxu0 0.0
  %359 = vmatpush1.msra.mxu0 %v129
  %360 = vmatprep.subr.mxu0 0.0
  %361 = vmatpush1.msra.mxu0 0.0
  %362 = vmatprep.subr.mxu0 0.0
  %363 = vmatpush1.msra.mxu0 0.0
  %364 = vmatprep.subr.mxu0 0.0
  %365 = vmatpush1.msra.mxu0 0.0
  %366 = vmatprep.subr.mxu0 0.0
  %367 = vmatpush1.msra.mxu0 0.0
  %368 = vmatprep.subr.mxu0 0.0
  %369 = vmatpush1.msra.mxu0 0.0
  %370 = vmatprep.subr.mxu0 0.0
  %371 = vmatpush1.msra.mxu0 0.0
  %372 = vmatprep.subr.mxu0 0.0
  %373 = vmatpush1.msra.mxu0 0.0
  %374 = vmatprep.subr.mxu0 0.0
  %375 = vmatpush1.msra.mxu0 0.0
  %376 = vmatprep.subr.mxu0 0.0
  %377 = vmatpush1.msra.mxu0 0.0
  %378 = vmatprep.subr.mxu0 0.0
  %379 = vmatpush1.msra.mxu0 0.0
  %380 = vmatprep.subr.mxu0 0.0
  %381 = vmatpush1.msra.mxu0 0.0
  %382 = vmatprep.subr.mxu0 0.0
  %383 = vmatpush1.msra.mxu0 0.0
  %384 = vmatprep.subr.mxu0 0.0
  %385 = vmatpush1.msra.mxu0 0.0
  %386 = vmatprep.subr.mxu0 0.0
  %387 = vmatpush1.msra.mxu0 0.0
  %388 = vmatprep.subr.mxu0 0.0
  %389 = vmatpush1.msra.mxu0 0.0
  %390 = vmatprep.subr.mxu0 0.0
  %391 = vmatpush1.msra.mxu0 0.0
  %392 = vmatprep.subr.mxu0 0.0
  %393 = vmatpush1.msra.mxu0 0.0
  %394 = vmatprep.subr.mxu0 0.0
  %395 = vmatpush1.msra.mxu0 0.0
  %396 = vmatprep.subr.mxu0 0.0
  %397 = vmatpush1.msra.mxu0 0.0
  %398 = vmatprep.subr.mxu0 0.0
  %399 = vmatpush1.msra.mxu0 0.0
  %400 = vmatprep.subr.mxu0 0.0
  %401 = vmatpush1.msra.mxu0 0.0
  %402 = vmatprep.subr.mxu0 0.0
  %403 = vmatpush1.msra.mxu0 0.0
  %404 = vmatprep.subr.mxu0 0.0
  %405 = vmatpush1.msra.mxu0 0.0
  %406 = vmatprep.subr.mxu0 0.0
  %407 = vmatpush1.msra.mxu0 0.0
  %408 = vmatprep.subr.mxu0 0.0
  %409 = vmatpush1.msra.mxu0 0.0
  %410 = vmatprep.subr.mxu0 0.0
  %411 = vmatpush1.msra.mxu0 0.0
  %412 = vmatprep.subr.mxu0 0.0
  %413 = vmatpush1.msra.mxu0 0.0
  %414 = vmatprep.subr.mxu0 0.0
  %415 = vmatpush1.msra.mxu0 0.0
  %416 = vmatprep.mubr.f32.mxu0 0.0
  %417 = vmatmul.mubr.f32.gmra.mrb[0].mxu0 %v350
  %v418 = vpop.f32.mrb[0].mxu0
  %v419 = vadd.f32 0.0, %v418
  %v420 = vpop.f32.mrb[0].mxu0
  %421 = vdwg.mxu0
  %v423 = vrot.slane %v419, 4
  %v425 = vadd.f32 %v118, %v423
  %v426 = vadd.f32 %v425, %v135
  %v427 = vxor.u32 %v426, 2147483648
  %v428 = vmul.f32 %v427, 1.442695
  %v429 = vpow.pop %v428
  %v430 = vadd.f32 %v429, 1.0
  %v431 = vrcp.pop %v430
  %v432 = vmul.f32 1.0, %v431
  %v433 = vtanh.pop %v426
  %v435 = vrot.slane %v337, 6
  %v437 = vmul.f32 %v432, %v435
  %439 = vrot.lane.b32.xlu0 %v433, 32
  %v440 = vpop.permute.xlu0 %439
  %v442 = vmul.f32 %v432, %v440
  %444 = vrot.lane.b32.xlu0 %v442, 32
  %v445 = vpop.permute.xlu0 %444
  %v447 = vadd.f32 %v437, %v445
  %v448 = vtanh.pop %v447
  %450 = vrot.lane.b32.xlu0 %v448, 32
  %v451 = vpop.permute.xlu0 %450
  %v453 = vmul.f32 %v432, %v451
  %v455 = vrot.slane %v453, 4
  %v457 = vadd.f32 %v347, %v455
  %458 = vrot.lane.b32.xlu0 %v455, 64
  %v459 = vpop.permute.xlu0 %458
  %v460 = vsel %vm44, %v459, 0
  %462 = vmatprep.subr.mxu0 0.0
  %463 = vmatpush1.msra.mxu0 %v126
  %464 = vmatprep.subr.mxu0 0.0
  %465 = vmatpush1.msra.mxu0 %v127
  %466 = vmatprep.subr.mxu0 0.0
  %467 = vmatpush1.msra.mxu0 %v128
  %468 = vmatprep.subr.mxu0 0.0
  %469 = vmatpush1.msra.mxu0 %v129
  %470 = vmatprep.subr.mxu0 0.0
  %471 = vmatpush1.msra.mxu0 0.0
  %472 = vmatprep.subr.mxu0 0.0
  %473 = vmatpush1.msra.mxu0 0.0
  %474 = vmatprep.subr.mxu0 0.0
  %475 = vmatpush1.msra.mxu0 0.0
  %476 = vmatprep.subr.mxu0 0.0
  %477 = vmatpush1.msra.mxu0 0.0
  %478 = vmatprep.subr.mxu0 0.0
  %479 = vmatpush1.msra.mxu0 0.0
  %480 = vmatprep.subr.mxu0 0.0
  %481 = vmatpush1.msra.mxu0 0.0
  %482 = vmatprep.subr.mxu0 0.0
  %483 = vmatpush1.msra.mxu0 0.0
  %484 = vmatprep.subr.mxu0 0.0
  %485 = vmatpush1.msra.mxu0 0.0
  %486 = vmatprep.subr.mxu0 0.0
  %487 = vmatpush1.msra.mxu0 0.0
  %488 = vmatprep.subr.mxu0 0.0
  %489 = vmatpush1.msra.mxu0 0.0
  %490 = vmatprep.subr.mxu0 0.0
  %491 = vmatpush1.msra.mxu0 0.0
  %492 = vmatprep.subr.mxu0 0.0
  %493 = vmatpush1.msra.mxu0 0.0
  %494 = vmatprep.subr.mxu0 0.0
  %495 = vmatpush1.msra.mxu0 0.0
  %496 = vmatprep.subr.mxu0 0.0
  %497 = vmatpush1.msra.mxu0 0.0
  %498 = vmatprep.subr.mxu0 0.0
  %499 = vmatpush1.msra.mxu0 0.0
  %500 = vmatprep.subr.mxu0 0.0
  %501 = vmatpush1.msra.mxu0 0.0
  %502 = vmatprep.subr.mxu0 0.0
  %503 = vmatpush1.msra.mxu0 0.0
  %504 = vmatprep.subr.mxu0 0.0
  %505 = vmatpush1.msra.mxu0 0.0
  %506 = vmatprep.subr.mxu0 0.0
  %507 = vmatpush1.msra.mxu0 0.0
  %508 = vmatprep.subr.mxu0 0.0
  %509 = vmatpush1.msra.mxu0 0.0
  %510 = vmatprep.subr.mxu0 0.0
  %511 = vmatpush1.msra.mxu0 0.0
  %512 = vmatprep.subr.mxu0 0.0
  %513 = vmatpush1.msra.mxu0 0.0
  %514 = vmatprep.subr.mxu0 0.0
  %515 = vmatpush1.msra.mxu0 0.0
  %516 = vmatprep.subr.mxu0 0.0
  %517 = vmatpush1.msra.mxu0 0.0
  %518 = vmatprep.subr.mxu0 0.0
  %519 = vmatpush1.msra.mxu0 0.0
  %520 = vmatprep.subr.mxu0 0.0
  %521 = vmatpush1.msra.mxu0 0.0
  %522 = vmatprep.subr.mxu0 0.0
  %523 = vmatpush1.msra.mxu0 0.0
  %524 = vmatprep.subr.mxu0 0.0
  %525 = vmatpush1.msra.mxu0 0.0
  %526 = vmatprep.mubr.f32.mxu0 0.0
  %527 = vmatmul.mubr.f32.gmra.mrb[0].mxu0 %v460
  %v528 = vpop.f32.mrb[0].mxu0
  %v529 = vadd.f32 0.0, %v528
  %v530 = vpop.f32.mrb[0].mxu0
  %531 = vdwg.mxu0
  %v533 = vrot.slane %v529, 2
  %v535 = vadd.f32 %v118, %v533
  %v536 = vadd.f32 %v535, %v135
  %v537 = vxor.u32 %v536, 2147483648
  %v538 = vmul.f32 %v537, 1.442695
  %v539 = vpow.pop %v538
  %v540 = vadd.f32 %v539, 1.0
  %v541 = vrcp.pop %v540
  %v542 = vmul.f32 1.0, %v541
  %v543 = vtanh.pop %v536
  %v545 = vrot.slane %v447, 6
  %v547 = vmul.f32 %v542, %v545
  %549 = vrot.lane.b32.xlu0 %v543, 32
  %v550 = vpop.permute.xlu0 %549
  %v552 = vmul.f32 %v542, %v550
  %554 = vrot.lane.b32.xlu0 %v552, 32
  %v555 = vpop.permute.xlu0 %554
  %v557 = vadd.f32 %v547, %v555
  %v558 = vtanh.pop %v557
  %560 = vrot.lane.b32.xlu0 %v558, 32
  %v561 = vpop.permute.xlu0 %560
  %v563 = vmul.f32 %v542, %v561
  %v565 = vrot.slane %v563, 6
  %v567 = vadd.f32 %v457, %v565
  %568 = vrot.lane.b32.xlu0 %v565, 64
  %v569 = vpop.permute.xlu0 %568
  %v570 = vsel %vm44, %v569, 0
  %572 = vmatprep.subr.mxu0 0.0
  %573 = vmatpush1.msra.mxu0 %v126
  %574 = vmatprep.subr.mxu0 0.0
  %575 = vmatpush1.msra.mxu0 %v127
  %576 = vmatprep.subr.mxu0 0.0
  %577 = vmatpush1.msra.mxu0 %v128
  %578 = vmatprep.subr.mxu0 0.0
  %579 = vmatpush1.msra.mxu0 %v129
  %580 = vmatprep.subr.mxu0 0.0
  %581 = vmatpush1.msra.mxu0 0.0
  %582 = vmatprep.subr.mxu0 0.0
  %583 = vmatpush1.msra.mxu0 0.0
  %584 = vmatprep.subr.mxu0 0.0
  %585 = vmatpush1.msra.mxu0 0.0
  %586 = vmatprep.subr.mxu0 0.0
  %587 = vmatpush1.msra.mxu0 0.0
  %588 = vmatprep.subr.mxu0 0.0
  %589 = vmatpush1.msra.mxu0 0.0
  %590 = vmatprep.subr.mxu0 0.0
  %591 = vmatpush1.msra.mxu0 0.0
  %592 = vmatprep.subr.mxu0 0.0
  %593 = vmatpush1.msra.mxu0 0.0
  %594 = vmatprep.subr.mxu0 0.0
  %595 = vmatpush1.msra.mxu0 0.0
  %596 = vmatprep.subr.mxu0 0.0
  %597 = vmatpush1.msra.mxu0 0.0
  %598 = vmatprep.subr.mxu0 0.0
  %599 = vmatpush1.msra.mxu0 0.0
  %600 = vmatprep.subr.mxu0 0.0
  %601 = vmatpush1.msra.mxu0 0.0
  %602 = vmatprep.subr.mxu0 0.0
  %603 = vmatpush1.msra.mxu0 0.0
  %604 = vmatprep.subr.mxu0 0.0
  %605 = vmatpush1.msra.mxu0 0.0
  %606 = vmatprep.subr.mxu0 0.0
  %607 = vmatpush1.msra.mxu0 0.0
  %608 = vmatprep.subr.mxu0 0.0
  %609 = vmatpush1.msra.mxu0 0.0
  %610 = vmatprep.subr.mxu0 0.0
  %611 = vmatpush1.msra.mxu0 0.0
  %612 = vmatprep.subr.mxu0 0.0
  %613 = vmatpush1.msra.mxu0 0.0
  %614 = vmatprep.subr.mxu0 0.0
  %615 = vmatpush1.msra.mxu0 0.0
  %616 = vmatprep.subr.mxu0 0.0
  %617 = vmatpush1.msra.mxu0 0.0
  %618 = vmatprep.subr.mxu0 0.0
  %619 = vmatpush1.msra.mxu0 0.0
  %620 = vmatprep.subr.mxu0 0.0
  %621 = vmatpush1.msra.mxu0 0.0
  %622 = vmatprep.subr.mxu0 0.0
  %623 = vmatpush1.msra.mxu0 0.0
  %624 = vmatprep.subr.mxu0 0.0
  %625 = vmatpush1.msra.mxu0 0.0
  %626 = vmatprep.subr.mxu0 0.0
  %627 = vmatpush1.msra.mxu0 0.0
  %628 = vmatprep.subr.mxu0 0.0
  %629 = vmatpush1.msra.mxu0 0.0
  %630 = vmatprep.subr.mxu0 0.0
  %631 = vmatpush1.msra.mxu0 0.0
  %632 = vmatprep.subr.mxu0 0.0
  %633 = vmatpush1.msra.mxu0 0.0
  %634 = vmatprep.subr.mxu0 0.0
  %635 = vmatpush1.msra.mxu0 0.0
  %636 = vmatprep.mubr.f32.mxu0 0.0
  %637 = vmatmul.mubr.f32.gmra.mrb[0].mxu0 %v570
  %v638 = vpop.f32.mrb[0].mxu0
  %v639 = vadd.f32 0.0, %v638
  %v640 = vpop.f32.mrb[0].mxu0
  %641 = vdwg.mxu0
  %v642 = vadd.f32 %v123, %v639
  %v643 = vadd.f32 %v642, %v135
  %v644 = vxor.u32 %v643, 2147483648
  %v645 = vmul.f32 %v644, 1.442695
  %v646 = vpow.pop %v645
  %v647 = vadd.f32 %v646, 1.0
  %v648 = vrcp.pop %v647
  %v649 = vmul.f32 1.0, %v648
  %v650 = vtanh.pop %v643
  %v652 = vrot.slane %v557, 6
  %v654 = vmul.f32 %v649, %v652
  %656 = vrot.lane.b32.xlu0 %v650, 32
  %v657 = vpop.permute.xlu0 %656
  %v659 = vmul.f32 %v649, %v657
  %661 = vrot.lane.b32.xlu0 %v659, 32
  %v662 = vpop.permute.xlu0 %661
  %v664 = vadd.f32 %v654, %v662
  %v665 = vtanh.pop %v664
  %667 = vrot.lane.b32.xlu0 %v665, 32
  %v668 = vpop.permute.xlu0 %667
  %v670 = vmul.f32 %v649, %v668
  %v671 = vadd.f32 %v567, %v670
  %673 = vrot.lane.b32.xlu0 %v670, 64
  %v674 = vpop.permute.xlu0 %673
  %v675 = vsel %vm44, %v674, 0
  %677 = vmatprep.subr.mxu0 0.0
  %678 = vmatpush1.msra.mxu0 %v126
  %679 = vmatprep.subr.mxu0 0.0
  %680 = vmatpush1.msra.mxu0 %v127
  %681 = vmatprep.subr.mxu0 0.0
  %682 = vmatpush1.msra.mxu0 %v128
  %683 = vmatprep.subr.mxu0 0.0
  %684 = vmatpush1.msra.mxu0 %v129
  %685 = vmatprep.subr.mxu0 0.0
  %686 = vmatpush1.msra.mxu0 0.0
  %687 = vmatprep.subr.mxu0 0.0
  %688 = vmatpush1.msra.mxu0 0.0
  %689 = vmatprep.subr.mxu0 0.0
  %690 = vmatpush1.msra.mxu0 0.0
  %691 = vmatprep.subr.mxu0 0.0
  %692 = vmatpush1.msra.mxu0 0.0
  %693 = vmatprep.subr.mxu0 0.0
  %694 = vmatpush1.msra.mxu0 0.0
  %695 = vmatprep.subr.mxu0 0.0
  %696 = vmatpush1.msra.mxu0 0.0
  %697 = vmatprep.subr.mxu0 0.0
  %698 = vmatpush1.msra.mxu0 0.0
  %699 = vmatprep.subr.mxu0 0.0
  %700 = vmatpush1.msra.mxu0 0.0
  %701 = vmatprep.subr.mxu0 0.0
  %702 = vmatpush1.msra.mxu0 0.0
  %703 = vmatprep.subr.mxu0 0.0
  %704 = vmatpush1.msra.mxu0 0.0
  %705 = vmatprep.subr.mxu0 0.0
  %706 = vmatpush1.msra.mxu0 0.0
  %707 = vmatprep.subr.mxu0 0.0
  %708 = vmatpush1.msra.mxu0 0.0
  %709 = vmatprep.subr.mxu0 0.0
  %710 = vmatpush1.msra.mxu0 0.0
  %711 = vmatprep.subr.mxu0 0.0
  %712 = vmatpush1.msra.mxu0 0.0
  %713 = vmatprep.subr.mxu0 0.0
  %714 = vmatpush1.msra.mxu0 0.0
  %715 = vmatprep.subr.mxu0 0.0
  %716 = vmatpush1.msra.mxu0 0.0
  %717 = vmatprep.subr.mxu0 0.0
  %718 = vmatpush1.msra.mxu0 0.0
  %719 = vmatprep.subr.mxu0 0.0
  %720 = vmatpush1.msra.mxu0 0.0
  %721 = vmatprep.subr.mxu0 0.0
  %722 = vmatpush1.msra.mxu0 0.0
  %723 = vmatprep.subr.mxu0 0.0
  %724 = vmatpush1.msra.mxu0 0.0
  %725 = vmatprep.subr.mxu0 0.0
  %726 = vmatpush1.msra.mxu0 0.0
  %727 = vmatprep.subr.mxu0 0.0
  %728 = vmatpush1.msra.mxu0 0.0
  %729 = vmatprep.subr.mxu0 0.0
  %730 = vmatpush1.msra.mxu0 0.0
  %731 = vmatprep.subr.mxu0 0.0
  %732 = vmatpush1.msra.mxu0 0.0
  %733 = vmatprep.subr.mxu0 0.0
  %734 = vmatpush1.msra.mxu0 0.0
  %735 = vmatprep.subr.mxu0 0.0
  %736 = vmatpush1.msra.mxu0 0.0
  %737 = vmatprep.subr.mxu0 0.0
  %738 = vmatpush1.msra.mxu0 0.0
  %739 = vmatprep.subr.mxu0 0.0
  %740 = vmatpush1.msra.mxu0 0.0
  %741 = vmatprep.mubr.f32.mxu0 0.0
  %742 = vmatmul.mubr.f32.gmra.mrb[0].mxu0 %v675
  %v743 = vpop.f32.mrb[0].mxu0
  %v744 = vadd.f32 0.0, %v743
  %v745 = vpop.f32.mrb[0].mxu0
  %746 = vdwg.mxu0
  %v748 = vrot.slane %v744, 6
  %v750 = vadd.f32 %v123, %v748
  %v751 = vadd.f32 %v750, %v135
  %v752 = vxor.u32 %v751, 2147483648
  %v753 = vmul.f32 %v752, 1.442695
  %v754 = vpow.pop %v753
  %v755 = vadd.f32 %v754, 1.0
  %v756 = vrcp.pop %v755
  %v757 = vmul.f32 1.0, %v756
  %v758 = vtanh.pop %v751
  %v760 = vrot.slane %v664, 6
  %v762 = vmul.f32 %v757, %v760
  %764 = vrot.lane.b32.xlu0 %v758, 32
  %v765 = vpop.permute.xlu0 %764
  %v767 = vmul.f32 %v757, %v765
  %769 = vrot.lane.b32.xlu0 %v767, 32
  %v770 = vpop.permute.xlu0 %769
  %v772 = vadd.f32 %v762, %v770
  %v773 = vtanh.pop %v772
  %775 = vrot.lane.b32.xlu0 %v773, 32
  %v776 = vpop.permute.xlu0 %775
  %v778 = vmul.f32 %v757, %v776
  %v780 = vrot.slane %v778, 2
  %v782 = vadd.f32 %v671, %v780
  %783 = vrot.lane.b32.xlu0 %v780, 64
  %v784 = vpop.permute.xlu0 %783
  %v785 = vsel %vm44, %v784, 0
  %787 = vmatprep.subr.mxu0 0.0
  %788 = vmatpush1.msra.mxu0 %v126
  %789 = vmatprep.subr.mxu0 0.0
  %790 = vmatpush1.msra.mxu0 %v127
  %791 = vmatprep.subr.mxu0 0.0
  %792 = vmatpush1.msra.mxu0 %v128
  %793 = vmatprep.subr.mxu0 0.0
  %794 = vmatpush1.msra.mxu0 %v129
  %795 = vmatprep.subr.mxu0 0.0
  %796 = vmatpush1.msra.mxu0 0.0
  %797 = vmatprep.subr.mxu0 0.0
  %798 = vmatpush1.msra.mxu0 0.0
  %799 = vmatprep.subr.mxu0 0.0
  %800 = vmatpush1.msra.mxu0 0.0
  %801 = vmatprep.subr.mxu0 0.0
  %802 = vmatpush1.msra.mxu0 0.0
  %803 = vmatprep.subr.mxu0 0.0
  %804 = vmatpush1.msra.mxu0 0.0
  %805 = vmatprep.subr.mxu0 0.0
  %806 = vmatpush1.msra.mxu0 0.0
  %807 = vmatprep.subr.mxu0 0.0
  %808 = vmatpush1.msra.mxu0 0.0
  %809 = vmatprep.subr.mxu0 0.0
  %810 = vmatpush1.msra.mxu0 0.0
  %811 = vmatprep.subr.mxu0 0.0
  %812 = vmatpush1.msra.mxu0 0.0
  %813 = vmatprep.subr.mxu0 0.0
  %814 = vmatpush1.msra.mxu0 0.0
  %815 = vmatprep.subr.mxu0 0.0
  %816 = vmatpush1.msra.mxu0 0.0
  %817 = vmatprep.subr.mxu0 0.0
  %818 = vmatpush1.msra.mxu0 0.0
  %819 = vmatprep.subr.mxu0 0.0
  %820 = vmatpush1.msra.mxu0 0.0
  %821 = vmatprep.subr.mxu0 0.0
  %822 = vmatpush1.msra.mxu0 0.0
  %823 = vmatprep.subr.mxu0 0.0
  %824 = vmatpush1.msra.mxu0 0.0
  %825 = vmatprep.subr.mxu0 0.0
  %826 = vmatpush1.msra.mxu0 0.0
  %827 = vmatprep.subr.mxu0 0.0
  %828 = vmatpush1.msra.mxu0 0.0
  %829 = vmatprep.subr.mxu0 0.0
  %830 = vmatpush1.msra.mxu0 0.0
  %831 = vmatprep.subr.mxu0 0.0
  %832 = vmatpush1.msra.mxu0 0.0
  %833 = vmatprep.subr.mxu0 0.0
  %834 = vmatpush1.msra.mxu0 0.0
  %835 = vmatprep.subr.mxu0 0.0
  %836 = vmatpush1.msra.mxu0 0.0
  %837 = vmatprep.subr.mxu0 0.0
  %838 = vmatpush1.msra.mxu0 0.0
  %839 = vmatprep.subr.mxu0 0.0
  %840 = vmatpush1.msra.mxu0 0.0
  %841 = vmatprep.subr.mxu0 0.0
  %842 = vmatpush1.msra.mxu0 0.0
  %843 = vmatprep.subr.mxu0 0.0
  %844 = vmatpush1.msra.mxu0 0.0
  %845 = vmatprep.subr.mxu0 0.0
  %846 = vmatpush1.msra.mxu0 0.0
  %847 = vmatprep.subr.mxu0 0.0
  %848 = vmatpush1.msra.mxu0 0.0
  %849 = vmatprep.subr.mxu0 0.0
  %850 = vmatpush1.msra.mxu0 0.0
  %851 = vmatprep.mubr.f32.mxu0 0.0
  %852 = vmatmul.mubr.f32.gmra.mrb[0].mxu0 %v785
  %v853 = vpop.f32.mrb[0].mxu0
  %v854 = vadd.f32 0.0, %v853
  %v855 = vpop.f32.mrb[0].mxu0
  %856 = vdwg.mxu0
  %v858 = vrot.slane %v854, 4
  %v860 = vadd.f32 %v123, %v858
  %v861 = vadd.f32 %v860, %v135
  %v862 = vxor.u32 %v861, 2147483648
  %v863 = vmul.f32 %v862, 1.442695
  %v864 = vpow.pop %v863
  %v865 = vadd.f32 %v864, 1.0
  %v866 = vrcp.pop %v865
  %v867 = vmul.f32 1.0, %v866
  %v868 = vtanh.pop %v861
  %v870 = vrot.slane %v772, 6
  %v872 = vmul.f32 %v867, %v870
  %874 = vrot.lane.b32.xlu0 %v868, 32
  %v875 = vpop.permute.xlu0 %874
  %v877 = vmul.f32 %v867, %v875
  %879 = vrot.lane.b32.xlu0 %v877, 32
  %v880 = vpop.permute.xlu0 %879
  %v882 = vadd.f32 %v872, %v880
  %v883 = vtanh.pop %v882
  %885 = vrot.lane.b32.xlu0 %v883, 32
  %v886 = vpop.permute.xlu0 %885
  %v888 = vmul.f32 %v867, %v886
  %v890 = vrot.slane %v888, 4
  %v892 = vadd.f32 %v782, %v890
  %893 = vrot.lane.b32.xlu0 %v890, 64
  %v894 = vpop.permute.xlu0 %893
  %v895 = vsel %vm44, %v894, 0
  %897 = vmatprep.subr.mxu0 0.0
  %898 = vmatpush1.msra.mxu0 %v126
  %899 = vmatprep.subr.mxu0 0.0
  %900 = vmatpush1.msra.mxu0 %v127
  %901 = vmatprep.subr.mxu0 0.0
  %902 = vmatpush1.msra.mxu0 %v128
  %903 = vmatprep.subr.mxu0 0.0
  %904 = vmatpush1.msra.mxu0 %v129
  %905 = vmatprep.subr.mxu0 0.0
  %906 = vmatpush1.msra.mxu0 0.0
  %907 = vmatprep.subr.mxu0 0.0
  %908 = vmatpush1.msra.mxu0 0.0
  %909 = vmatprep.subr.mxu0 0.0
  %910 = vmatpush1.msra.mxu0 0.0
  %911 = vmatprep.subr.mxu0 0.0
  %912 = vmatpush1.msra.mxu0 0.0
  %913 = vmatprep.subr.mxu0 0.0
  %914 = vmatpush1.msra.mxu0 0.0
  %915 = vmatprep.subr.mxu0 0.0
  %916 = vmatpush1.msra.mxu0 0.0
  %917 = vmatprep.subr.mxu0 0.0
  %918 = vmatpush1.msra.mxu0 0.0
  %919 = vmatprep.subr.mxu0 0.0
  %920 = vmatpush1.msra.mxu0 0.0
  %921 = vmatprep.subr.mxu0 0.0
  %922 = vmatpush1.msra.mxu0 0.0
  %923 = vmatprep.subr.mxu0 0.0
  %924 = vmatpush1.msra.mxu0 0.0
  %925 = vmatprep.subr.mxu0 0.0
  %926 = vmatpush1.msra.mxu0 0.0
  %927 = vmatprep.subr.mxu0 0.0
  %928 = vmatpush1.msra.mxu0 0.0
  %929 = vmatprep.subr.mxu0 0.0
  %930 = vmatpush1.msra.mxu0 0.0
  %931 = vmatprep.subr.mxu0 0.0
  %932 = vmatpush1.msra.mxu0 0.0
  %933 = vmatprep.subr.mxu0 0.0
  %934 = vmatpush1.msra.mxu0 0.0
  %935 = vmatprep.subr.mxu0 0.0
  %936 = vmatpush1.msra.mxu0 0.0
  %937 = vmatprep.subr.mxu0 0.0
  %938 = vmatpush1.msra.mxu0 0.0
  %939 = vmatprep.subr.mxu0 0.0
  %940 = vmatpush1.msra.mxu0 0.0
  %941 = vmatprep.subr.mxu0 0.0
  %942 = vmatpush1.msra.mxu0 0.0
  %943 = vmatprep.subr.mxu0 0.0
  %944 = vmatpush1.msra.mxu0 0.0
  %945 = vmatprep.subr.mxu0 0.0
  %946 = vmatpush1.msra.mxu0 0.0
  %947 = vmatprep.subr.mxu0 0.0
  %948 = vmatpush1.msra.mxu0 0.0
  %949 = vmatprep.subr.mxu0 0.0
  %950 = vmatpush1.msra.mxu0 0.0
  %951 = vmatprep.subr.mxu0 0.0
  %952 = vmatpush1.msra.mxu0 0.0
  %953 = vmatprep.subr.mxu0 0.0
  %954 = vmatpush1.msra.mxu0 0.0
  %955 = vmatprep.subr.mxu0 0.0
  %956 = vmatpush1.msra.mxu0 0.0
  %957 = vmatprep.subr.mxu0 0.0
  %958 = vmatpush1.msra.mxu0 0.0
  %959 = vmatprep.subr.mxu0 0.0
  %960 = vmatpush1.msra.mxu0 0.0
  %961 = vmatprep.mubr.f32.mxu0 0.0
  %962 = vmatmul.mubr.f32.gmra.mrb[0].mxu0 %v895
  %v963 = vpop.f32.mrb[0].mxu0
  %v964 = vadd.f32 0.0, %v963
  %v965 = vpop.f32.mrb[0].mxu0
  %966 = vdwg.mxu0
  %v968 = vrot.slane %v964, 2
  %v970 = vadd.f32 %v123, %v968
  %v971 = vadd.f32 %v970, %v135
  %v972 = vxor.u32 %v971, 2147483648
  %v973 = vmul.f32 %v972, 1.442695
  %v974 = vpow.pop %v973
  %v975 = vadd.f32 %v974, 1.0
  %v976 = vrcp.pop %v975
  %v977 = vmul.f32 1.0, %v976
  %v978 = vtanh.pop %v971
  %v980 = vrot.slane %v882, 6
  %v982 = vmul.f32 %v977, %v980
  %984 = vrot.lane.b32.xlu0 %v978, 32
  %v985 = vpop.permute.xlu0 %984
  %v987 = vmul.f32 %v977, %v985
  %989 = vrot.lane.b32.xlu0 %v987, 32
  %v990 = vpop.permute.xlu0 %989
  %v992 = vadd.f32 %v982, %v990
  %v993 = vtanh.pop %v992
  %995 = vrot.lane.b32.xlu0 %v993, 32
  %v996 = vpop.permute.xlu0 %995
  %v998 = vmul.f32 %v977, %v996
  %v1000 = vrot.slane %v998, 6
  %v1002 = vadd.f32 %v892, %v1000
  %v1003 = vld [vmem:[%s1] sm:$0xff]
  %v1004 = vld [vmem:[%s1 + $0x8] sm:$0xf]
  %v1005 = vld [vmem:[%s5] sm:$0xff]
  %v1006 = vld [vmem:[%s5 + $0x8] sm:$0xff]
  %v1007 = vld [vmem:[%s5 + $0x10] sm:$0xff]
  %v1008 = vld [vmem:[%s5 + $0x18] sm:$0xff]
  %v1010 = vsel %vm44, %v1003, 0
  %v1013 = vsel %vm44, %v1004, 0
  %1015 = vmatprep.subr.mxu0 0.0
  %1016 = vmatpush1.msra.mxu0 %v1005
  %1017 = vmatprep.subr.mxu0 0.0
  %1018 = vmatpush1.msra.mxu0 %v1006
  %1019 = vmatprep.subr.mxu0 0.0
  %1020 = vmatpush1.msra.mxu0 %v1007
  %1021 = vmatprep.subr.mxu0 0.0
  %1022 = vmatpush1.msra.mxu0 %v1008
  %1023 = vmatprep.subr.mxu0 0.0
  %1024 = vmatpush1.msra.mxu0 0.0
  %1025 = vmatprep.subr.mxu0 0.0
  %1026 = vmatpush1.msra.mxu0 0.0
  %1027 = vmatprep.subr.mxu0 0.0
  %1028 = vmatpush1.msra.mxu0 0.0
  %1029 = vmatprep.subr.mxu0 0.0
  %1030 = vmatpush1.msra.mxu0 0.0
  %1031 = vmatprep.subr.mxu0 0.0
  %1032 = vmatpush1.msra.mxu0 0.0
  %1033 = vmatprep.subr.mxu0 0.0
  %1034 = vmatpush1.msra.mxu0 0.0
  %1035 = vmatprep.subr.mxu0 0.0
  %1036 = vmatpush1.msra.mxu0 0.0
  %1037 = vmatprep.subr.mxu0 0.0
  %1038 = vmatpush1.msra.mxu0 0.0
  %1039 = vmatprep.subr.mxu0 0.0
  %1040 = vmatpush1.msra.mxu0 0.0
  %1041 = vmatprep.subr.mxu0 0.0
  %1042 = vmatpush1.msra.mxu0 0.0
  %1043 = vmatprep.subr.mxu0 0.0
  %1044 = vmatpush1.msra.mxu0 0.0
  %1045 = vmatprep.subr.mxu0 0.0
  %1046 = vmatpush1.msra.mxu0 0.0
  %1047 = vmatprep.subr.mxu0 0.0
  %1048 = vmatpush1.msra.mxu0 0.0
  %1049 = vmatprep.subr.mxu0 0.0
  %1050 = vmatpush1.msra.mxu0 0.0
  %1051 = vmatprep.subr.mxu0 0.0
  %1052 = vmatpush1.msra.mxu0 0.0
  %1053 = vmatprep.subr.mxu0 0.0
  %1054 = vmatpush1.msra.mxu0 0.0
  %1055 = vmatprep.subr.mxu0 0.0
  %1056 = vmatpush1.msra.mxu0 0.0
  %1057 = vmatprep.subr.mxu0 0.0
  %1058 = vmatpush1.msra.mxu0 0.0
  %1059 = vmatprep.subr.mxu0 0.0
  %1060 = vmatpush1.msra.mxu0 0.0
  %1061 = vmatprep.subr.mxu0 0.0
  %1062 = vmatpush1.msra.mxu0 0.0
  %1063 = vmatprep.subr.mxu0 0.0
  %1064 = vmatpush1.msra.mxu0 0.0
  %1065 = vmatprep.subr.mxu0 0.0
  %1066 = vmatpush1.msra.mxu0 0.0
  %1067 = vmatprep.subr.mxu0 0.0
  %1068 = vmatpush1.msra.mxu0 0.0
  %1069 = vmatprep.subr.mxu0 0.0
  %1070 = vmatpush1.msra.mxu0 0.0
  %1071 = vmatprep.subr.mxu0 0.0
  %1072 = vmatpush1.msra.mxu0 0.0
  %1073 = vmatprep.subr.mxu0 0.0
  %1074 = vmatpush1.msra.mxu0 0.0
  %1075 = vmatprep.subr.mxu0 0.0
  %1076 = vmatpush1.msra.mxu0 0.0
  %1077 = vmatprep.subr.mxu0 0.0
  %1078 = vmatpush1.msra.mxu0 0.0
  %1079 = vmatprep.mubr.f32.mxu0 0.0
  %1080 = vmatmul.mubr.f32.gmra.mrb[0].mxu0 %v1010
  %v1081 = vpop.f32.mrb[0].mxu0
  %v1082 = vadd.f32 0.0, %v1081
  %v1083 = vpop.f32.mrb[0].mxu0
  %1084 = vmatprep.mubr.f32.mxu0 0.0
  %1085 = vmatmul.mubr.f32.gmra.mrb[0].mxu0 %v1013
  %v1086 = vpop.f32.mrb[0].mxu0
  %v1087 = vadd.f32 0.0, %v1086
  %v1088 = vpop.f32.mrb[0].mxu0
  %1089 = vdwg.mxu0
  %v1090 = vld [vmem:[%s7] sm:$0xff]
  %v1091 = vld [vmem:[%s7 + $0x8] sm:$0xff]
  %v1092 = vld [vmem:[%s7 + $0x10] sm:$0xff]
  %v1093 = vld [vmem:[%s7 + $0x18] sm:$0xff]
  %v1094 = vld [vmem:[%s8] sm:$0x1]
  %v1096 = vlaneseq
  %v1097 = vshrl.u32 %v1096, 7
  %v1098 = vsub.s32 0, %v1097
  %v1099 = vrot.slane %v1094, %v1098
  %v1101 = vld [vmem:[%s6] sm:$0xff]
  %v1102 = vld [vmem:[%s6 + $0x8] sm:$0xff]
  %v1103 = vld [vmem:[%s6 + $0x10] sm:$0xff]
  %v1104 = vld [vmem:[%s6 + $0x18] sm:$0xff]
  %1106 = vrot.lane.b32.xlu0 %v1002, 64
  %v1107 = vpop.permute.xlu0 %1106
  %v1108 = vsel %vm44, %v1107, 0
  %1110 = vmatprep.subr.mxu0 0.0
  %1111 = vmatpush1.msra.mxu0 %v1101
  %1112 = vmatprep.subr.mxu0 0.0
  %1113 = vmatpush1.msra.mxu0 %v1102
  %1114 = vmatprep.subr.mxu0 0.0
  %1115 = vmatpush1.msra.mxu0 %v1103
  %1116 = vmatprep.subr.mxu0 0.0
  %1117 = vmatpush1.msra.mxu0 %v1104
  %1118 = vmatprep.subr.mxu0 0.0
  %1119 = vmatpush1.msra.mxu0 0.0
  %1120 = vmatprep.subr.mxu0 0.0
  %1121 = vmatpush1.msra.mxu0 0.0
  %1122 = vmatprep.subr.mxu0 0.0
  %1123 = vmatpush1.msra.mxu0 0.0
  %1124 = vmatprep.subr.mxu0 0.0
  %1125 = vmatpush1.msra.mxu0 0.0
  %1126 = vmatprep.subr.mxu0 0.0
  %1127 = vmatpush1.msra.mxu0 0.0
  %1128 = vmatprep.subr.mxu0 0.0
  %1129 = vmatpush1.msra.mxu0 0.0
  %1130 = vmatprep.subr.mxu0 0.0
  %1131 = vmatpush1.msra.mxu0 0.0
  %1132 = vmatprep.subr.mxu0 0.0
  %1133 = vmatpush1.msra.mxu0 0.0
  %1134 = vmatprep.subr.mxu0 0.0
  %1135 = vmatpush1.msra.mxu0 0.0
  %1136 = vmatprep.subr.mxu0 0.0
  %1137 = vmatpush1.msra.mxu0 0.0
  %1138 = vmatprep.subr.mxu0 0.0
  %1139 = vmatpush1.msra.mxu0 0.0
  %1140 = vmatprep.subr.mxu0 0.0
  %1141 = vmatpush1.msra.mxu0 0.0
  %1142 = vmatprep.subr.mxu0 0.0
  %1143 = vmatpush1.msra.mxu0 0.0
  %1144 = vmatprep.subr.mxu0 0.0
  %1145 = vmatpush1.msra.mxu0 0.0
  %1146 = vmatprep.subr.mxu0 0.0
  %1147 = vmatpush1.msra.mxu0 0.0
  %1148 = vmatprep.subr.mxu0 0.0
  %1149 = vmatpush1.msra.mxu0 0.0
  %1150 = vmatprep.subr.mxu0 0.0
  %1151 = vmatpush1.msra.mxu0 0.0
  %1152 = vmatprep.subr.mxu0 0.0
  %1153 = vmatpush1.msra.mxu0 0.0
  %1154 = vmatprep.subr.mxu0 0.0
  %1155 = vmatpush1.msra.mxu0 0.0
  %1156 = vmatprep.subr.mxu0 0.0
  %1157 = vmatpush1.msra.mxu0 0.0
  %1158 = vmatprep.subr.mxu0 0.0
  %1159 = vmatpush1.msra.mxu0 0.0
  %1160 = vmatprep.subr.mxu0 0.0
  %1161 = vmatpush1.msra.mxu0 0.0
  %1162 = vmatprep.subr.mxu0 0.0
  %1163 = vmatpush1.msra.mxu0 0.0
  %1164 = vmatprep.subr.mxu0 0.0
  %1165 = vmatpush1.msra.mxu0 0.0
  %1166 = vmatprep.subr.mxu0 0.0
  %1167 = vmatpush1.msra.mxu0 0.0
  %1168 = vmatprep.subr.mxu0 0.0
  %1169 = vmatpush1.msra.mxu0 0.0
  %1170 = vmatprep.subr.mxu0 0.0
  %1171 = vmatpush1.msra.mxu0 0.0
  %1172 = vmatprep.subr.mxu0 0.0
  %1173 = vmatpush1.msra.mxu0 0.0
  %1174 = vmatprep.mubr.f32.mxu0 0.0
  %1175 = vmatmul.mubr.f32.gmra.mrb[0].mxu0 %v1108
  %v1176 = vpop.f32.mrb[0].mxu0
  %v1177 = vadd.f32 0.0, %v1176
  %v1178 = vpop.f32.mrb[0].mxu0
  %1179 = vdwg.mxu0
  %v1180 = vadd.f32 %v1099, %v1177
  %1181 = vrot.lane.b32.xlu0 %v1000, 64
  %v1182 = vpop.permute.xlu0 %1181
  %v1183 = vsel %vm44, %v1182, 0
  %1185 = vmatprep.subr.mxu0 0.0
  %1186 = vmatpush1.msra.mxu0 %v1090
  %1187 = vmatprep.subr.mxu0 0.0
  %1188 = vmatpush1.msra.mxu0 %v1091
  %1189 = vmatprep.subr.mxu0 0.0
  %1190 = vmatpush1.msra.mxu0 %v1092
  %1191 = vmatprep.subr.mxu0 0.0
  %1192 = vmatpush1.msra.mxu0 %v1093
  %1193 = vmatprep.subr.mxu0 0.0
  %1194 = vmatpush1.msra.mxu0 0.0
  %1195 = vmatprep.subr.mxu0 0.0
  %1196 = vmatpush1.msra.mxu0 0.0
  %1197 = vmatprep.subr.mxu0 0.0
  %1198 = vmatpush1.msra.mxu0 0.0
  %1199 = vmatprep.subr.mxu0 0.0
  %1200 = vmatpush1.msra.mxu0 0.0
  %1201 = vmatprep.subr.mxu0 0.0
  %1202 = vmatpush1.msra.mxu0 0.0
  %1203 = vmatprep.subr.mxu0 0.0
  %1204 = vmatpush1.msra.mxu0 0.0
  %1205 = vmatprep.subr.mxu0 0.0
  %1206 = vmatpush1.msra.mxu0 0.0
  %1207 = vmatprep.subr.mxu0 0.0
  %1208 = vmatpush1.msra.mxu0 0.0
  %1209 = vmatprep.subr.mxu0 0.0
  %1210 = vmatpush1.msra.mxu0 0.0
  %1211 = vmatprep.subr.mxu0 0.0
  %1212 = vmatpush1.msra.mxu0 0.0
  %1213 = vmatprep.subr.mxu0 0.0
  %1214 = vmatpush1.msra.mxu0 0.0
  %1215 = vmatprep.subr.mxu0 0.0
  %1216 = vmatpush1.msra.mxu0 0.0
  %1217 = vmatprep.subr.mxu0 0.0
  %1218 = vmatpush1.msra.mxu0 0.0
  %1219 = vmatprep.subr.mxu0 0.0
  %1220 = vmatpush1.msra.mxu0 0.0
  %1221 = vmatprep.subr.mxu0 0.0
  %1222 = vmatpush1.msra.mxu0 0.0
  %1223 = vmatprep.subr.mxu0 0.0
  %1224 = vmatpush1.msra.mxu0 0.0
  %1225 = vmatprep.subr.mxu0 0.0
  %1226 = vmatpush1.msra.mxu0 0.0
  %1227 = vmatprep.subr.mxu0 0.0
  %1228 = vmatpush1.msra.mxu0 0.0
  %1229 = vmatprep.subr.mxu0 0.0
  %1230 = vmatpush1.msra.mxu0 0.0
  %1231 = vmatprep.subr.mxu0 0.0
  %1232 = vmatpush1.msra.mxu0 0.0
  %1233 = vmatprep.subr.mxu0 0.0
  %1234 = vmatpush1.msra.mxu0 0.0
  %1235 = vmatprep.subr.mxu0 0.0
  %1236 = vmatpush1.msra.mxu0 0.0
  %1237 = vmatprep.subr.mxu0 0.0
  %1238 = vmatpush1.msra.mxu0 0.0
  %1239 = vmatprep.subr.mxu0 0.0
  %1240 = vmatpush1.msra.mxu0 0.0
  %1241 = vmatprep.subr.mxu0 0.0
  %1242 = vmatpush1.msra.mxu0 0.0
  %1243 = vmatprep.subr.mxu0 0.0
  %1244 = vmatpush1.msra.mxu0 0.0
  %1245 = vmatprep.subr.mxu0 0.0
  %1246 = vmatpush1.msra.mxu0 0.0
  %1247 = vmatprep.subr.mxu0 0.0
  %1248 = vmatpush1.msra.mxu0 0.0
  %1249 = vmatprep.mubr.f32.mxu0 0.0
  %1250 = vmatmul.mubr.f32.gmra.mrb[0].mxu0 %v1183
  %v1251 = vpop.f32.mrb[0].mxu0
  %v1252 = vadd.f32 0.0, %v1251
  %v1253 = vpop.f32.mrb[0].mxu0
  %1254 = vdwg.mxu0
  %v1255 = vadd.f32 %v1082, %v1252
  %v1256 = vadd.f32 %v1255, %v1180
  %v1257 = vxor.u32 %v1256, 2147483648
  %v1258 = vmul.f32 %v1257, 1.442695
  %v1259 = vpow.pop %v1258
  %v1260 = vadd.f32 %v1259, 1.0
  %v1261 = vrcp.pop %v1260
  %v1262 = vmul.f32 1.0, %v1261
  %v1263 = vtanh.pop %v1256
  %v1265 = vrot.slane %v992, 6
  %v1267 = vmul.f32 %v1262, %v1265
  %1269 = vrot.lane.b32.xlu0 %v1263, 32
  %v1270 = vpop.permute.xlu0 %1269
  %v1272 = vmul.f32 %v1262, %v1270
  %1274 = vrot.lane.b32.xlu0 %v1272, 32
  %v1275 = vpop.permute.xlu0 %1274
  %v1277 = vadd.f32 %v1267, %v1275
  %v1278 = vtanh.pop %v1277
  %1280 = vrot.lane.b32.xlu0 %v1278, 32
  %v1281 = vpop.permute.xlu0 %1280
  %v1283 = vmul.f32 %v1262, %v1281
  %1285 = vrot.lane.b32.xlu0 %v1283, 64
  %v1286 = vpop.permute.xlu0 %1285
  %v1287 = vsel %vm44, %v1286, 0
  %1289 = vmatprep.subr.mxu0 0.0
  %1290 = vmatpush1.msra.mxu0 %v1090
  %1291 = vmatprep.subr.mxu0 0.0
  %1292 = vmatpush1.msra.mxu0 %v1091
  %1293 = vmatprep.subr.mxu0 0.0
  %1294 = vmatpush1.msra.mxu0 %v1092
  %1295 = vmatprep.subr.mxu0 0.0
  %1296 = vmatpush1.msra.mxu0 %v1093
  %1297 = vmatprep.subr.mxu0 0.0
  %1298 = vmatpush1.msra.mxu0 0.0
  %1299 = vmatprep.subr.mxu0 0.0
  %1300 = vmatpush1.msra.mxu0 0.0
  %1301 = vmatprep.subr.mxu0 0.0
  %1302 = vmatpush1.msra.mxu0 0.0
  %1303 = vmatprep.subr.mxu0 0.0
  %1304 = vmatpush1.msra.mxu0 0.0
  %1305 = vmatprep.subr.mxu0 0.0
  %1306 = vmatpush1.msra.mxu0 0.0
  %1307 = vmatprep.subr.mxu0 0.0
  %1308 = vmatpush1.msra.mxu0 0.0
  %1309 = vmatprep.subr.mxu0 0.0
  %1310 = vmatpush1.msra.mxu0 0.0
  %1311 = vmatprep.subr.mxu0 0.0
  %1312 = vmatpush1.msra.mxu0 0.0
  %1313 = vmatprep.subr.mxu0 0.0
  %1314 = vmatpush1.msra.mxu0 0.0
  %1315 = vmatprep.subr.mxu0 0.0
  %1316 = vmatpush1.msra.mxu0 0.0
  %1317 = vmatprep.subr.mxu0 0.0
  %1318 = vmatpush1.msra.mxu0 0.0
  %1319 = vmatprep.subr.mxu0 0.0
  %1320 = vmatpush1.msra.mxu0 0.0
  %1321 = vmatprep.subr.mxu0 0.0
  %1322 = vmatpush1.msra.mxu0 0.0
  %1323 = vmatprep.subr.mxu0 0.0
  %1324 = vmatpush1.msra.mxu0 0.0
  %1325 = vmatprep.subr.mxu0 0.0
  %1326 = vmatpush1.msra.mxu0 0.0
  %1327 = vmatprep.subr.mxu0 0.0
  %1328 = vmatpush1.msra.mxu0 0.0
  %1329 = vmatprep.subr.mxu0 0.0
  %1330 = vmatpush1.msra.mxu0 0.0
  %1331 = vmatprep.subr.mxu0 0.0
  %1332 = vmatpush1.msra.mxu0 0.0
  %1333 = vmatprep.subr.mxu0 0.0
  %1334 = vmatpush1.msra.mxu0 0.0
  %1335 = vmatprep.subr.mxu0 0.0
  %1336 = vmatpush1.msra.mxu0 0.0
  %1337 = vmatprep.subr.mxu0 0.0
  %1338 = vmatpush1.msra.mxu0 0.0
  %1339 = vmatprep.subr.mxu0 0.0
  %1340 = vmatpush1.msra.mxu0 0.0
  %1341 = vmatprep.subr.mxu0 0.0
  %1342 = vmatpush1.msra.mxu0 0.0
  %1343 = vmatprep.subr.mxu0 0.0
  %1344 = vmatpush1.msra.mxu0 0.0
  %1345 = vmatprep.subr.mxu0 0.0
  %1346 = vmatpush1.msra.mxu0 0.0
  %1347 = vmatprep.subr.mxu0 0.0
  %1348 = vmatpush1.msra.mxu0 0.0
  %1349 = vmatprep.subr.mxu0 0.0
  %1350 = vmatpush1.msra.mxu0 0.0
  %1351 = vmatprep.subr.mxu0 0.0
  %1352 = vmatpush1.msra.mxu0 0.0
  %1353 = vmatprep.mubr.f32.mxu0 0.0
  %1354 = vmatmul.mubr.f32.gmra.mrb[0].mxu0 %v1287
  %v1355 = vpop.f32.mrb[0].mxu0
  %v1356 = vadd.f32 0.0, %v1355
  %v1357 = vpop.f32.mrb[0].mxu0
  %1358 = vdwg.mxu0
  %v1360 = vrot.slane %v1356, 6
  %v1362 = vadd.f32 %v1082, %v1360
  %v1364 = vrot.slane %v1180, 6
  %v1366 = vadd.f32 %v1362, %v1364
  %v1367 = vxor.u32 %v1366, 2147483648
  %v1368 = vmul.f32 %v1367, 1.442695
  %v1369 = vpow.pop %v1368
  %v1370 = vadd.f32 %v1369, 1.0
  %v1371 = vrcp.pop %v1370
  %v1372 = vmul.f32 1.0, %v1371
  %v1373 = vtanh.pop %v1366
  %v1375 = vrot.slane %v1277, 6
  %v1377 = vmul.f32 %v1372, %v1375
  %1379 = vrot.lane.b32.xlu0 %v1373, 32
  %v1380 = vpop.permute.xlu0 %1379
  %v1382 = vmul.f32 %v1372, %v1380
  %1384 = vrot.lane.b32.xlu0 %v1382, 32
  %v1385 = vpop.permute.xlu0 %1384
  %v1387 = vadd.f32 %v1377, %v1385
  %v1388 = vtanh.pop %v1387
  %1390 = vrot.lane.b32.xlu0 %v1388, 32
  %v1391 = vpop.permute.xlu0 %1390
  %v1393 = vmul.f32 %v1372, %v1391
  %v1395 = vrot.slane %v1393, 2
  %1396 = vrot.lane.b32.xlu0 %v1395, 64
  %v1397 = vpop.permute.xlu0 %1396
  %v1398 = vsel %vm44, %v1397, 0
  %1400 = vmatprep.subr.mxu0 0.0
  %1401 = vmatpush1.msra.mxu0 %v1090
  %1402 = vmatprep.subr.mxu0 0.0
  %1403 = vmatpush1.msra.mxu0 %v1091
  %1404 = vmatprep.subr.mxu0 0.0
  %1405 = vmatpush1.msra.mxu0 %v1092
  %1406 = vmatprep.subr.mxu0 0.0
  %1407 = vmatpush1.msra.mxu0 %v1093
  %1408 = vmatprep.subr.mxu0 0.0
  %1409 = vmatpush1.msra.mxu0 0.0
  %1410 = vmatprep.subr.mxu0 0.0
  %1411 = vmatpush1.msra.mxu0 0.0
  %1412 = vmatprep.subr.mxu0 0.0
  %1413 = vmatpush1.msra.mxu0 0.0
  %1414 = vmatprep.subr.mxu0 0.0
  %1415 = vmatpush1.msra.mxu0 0.0
  %1416 = vmatprep.subr.mxu0 0.0
  %1417 = vmatpush1.msra.mxu0 0.0
  %1418 = vmatprep.subr.mxu0 0.0
  %1419 = vmatpush1.msra.mxu0 0.0
  %1420 = vmatprep.subr.mxu0 0.0
  %1421 = vmatpush1.msra.mxu0 0.0
  %1422 = vmatprep.subr.mxu0 0.0
  %1423 = vmatpush1.msra.mxu0 0.0
  %1424 = vmatprep.subr.mxu0 0.0
  %1425 = vmatpush1.msra.mxu0 0.0
  %1426 = vmatprep.subr.mxu0 0.0
  %1427 = vmatpush1.msra.mxu0 0.0
  %1428 = vmatprep.subr.mxu0 0.0
  %1429 = vmatpush1.msra.mxu0 0.0
  %1430 = vmatprep.subr.mxu0 0.0
  %1431 = vmatpush1.msra.mxu0 0.0
  %1432 = vmatprep.subr.mxu0 0.0
  %1433 = vmatpush1.msra.mxu0 0.0
  %1434 = vmatprep.subr.mxu0 0.0
  %1435 = vmatpush1.msra.mxu0 0.0
  %1436 = vmatprep.subr.mxu0 0.0
  %1437 = vmatpush1.msra.mxu0 0.0
  %1438 = vmatprep.subr.mxu0 0.0
  %1439 = vmatpush1.msra.mxu0 0.0
  %1440 = vmatprep.subr.mxu0 0.0
  %1441 = vmatpush1.msra.mxu0 0.0
  %1442 = vmatprep.subr.mxu0 0.0
  %1443 = vmatpush1.msra.mxu0 0.0
  %1444 = vmatprep.subr.mxu0 0.0
  %1445 = vmatpush1.msra.mxu0 0.0
  %1446 = vmatprep.subr.mxu0 0.0
  %1447 = vmatpush1.msra.mxu0 0.0
  %1448 = vmatprep.subr.mxu0 0.0
  %1449 = vmatpush1.msra.mxu0 0.0
  %1450 = vmatprep.subr.mxu0 0.0
  %1451 = vmatpush1.msra.mxu0 0.0
  %1452 = vmatprep.subr.mxu0 0.0
  %1453 = vmatpush1.msra.mxu0 0.0
  %1454 = vmatprep.subr.mxu0 0.0
  %1455 = vmatpush1.msra.mxu0 0.0
  %1456 = vmatprep.subr.mxu0 0.0
  %1457 = vmatpush1.msra.mxu0 0.0
  %1458 = vmatprep.subr.mxu0 0.0
  %1459 = vmatpush1.msra.mxu0 0.0
  %1460 = vmatprep.subr.mxu0 0.0
  %1461 = vmatpush1.msra.mxu0 0.0
  %1462 = vmatprep.subr.mxu0 0.0
  %1463 = vmatpush1.msra.mxu0 0.0
  %1464 = vmatprep.mubr.f32.mxu0 0.0
  %1465 = vmatmul.mubr.f32.gmra.mrb[0].mxu0 %v1398
  %v1466 = vpop.f32.mrb[0].mxu0
  %v1467 = vadd.f32 0.0, %v1466
  %v1468 = vpop.f32.mrb[0].mxu0
  %1469 = vdwg.mxu0
  %v1471 = vrot.slane %v1467, 4
  %v1473 = vadd.f32 %v1082, %v1471
  %v1474 = vrot.slane %v1180, 4
  %v1476 = vadd.f32 %v1473, %v1474
  %v1477 = vxor.u32 %v1476, 2147483648
  %v1478 = vmul.f32 %v1477, 1.442695
  %v1479 = vpow.pop %v1478
  %v1480 = vadd.f32 %v1479, 1.0
  %v1481 = vrcp.pop %v1480
  %v1482 = vmul.f32 1.0, %v1481
  %v1483 = vtanh.pop %v1476
  %v1485 = vrot.slane %v1387, 6
  %v1487 = vmul.f32 %v1482, %v1485
  %1489 = vrot.lane.b32.xlu0 %v1483, 32
  %v1490 = vpop.permute.xlu0 %1489
  %v1492 = vmul.f32 %v1482, %v1490
  %1494 = vrot.lane.b32.xlu0 %v1492, 32
  %v1495 = vpop.permute.xlu0 %1494
  %v1497 = vadd.f32 %v1487, %v1495
  %v1498 = vtanh.pop %v1497
  %1500 = vrot.lane.b32.xlu0 %v1498, 32
  %v1501 = vpop.permute.xlu0 %1500
  %v1503 = vmul.f32 %v1482, %v1501
  %v1505 = vrot.slane %v1503, 4
  %1506 = vrot.lane.b32.xlu0 %v1505, 64
  %v1507 = vpop.permute.xlu0 %1506
  %v1508 = vsel %vm44, %v1507, 0
  %1510 = vmatprep.subr.mxu0 0.0
  %1511 = vmatpush1.msra.mxu0 %v1090
  %1512 = vmatprep.subr.mxu0 0.0
  %1513 = vmatpush1.msra.mxu0 %v1091
  %1514 = vmatprep.subr.mxu0 0.0
  %1515 = vmatpush1.msra.mxu0 %v1092
  %1516 = vmatprep.subr.mxu0 0.0
  %1517 = vmatpush1.msra.mxu0 %v1093
  %1518 = vmatprep.subr.mxu0 0.0
  %1519 = vmatpush1.msra.mxu0 0.0
  %1520 = vmatprep.subr.mxu0 0.0
  %1521 = vmatpush1.msra.mxu0 0.0
  %1522 = vmatprep.subr.mxu0 0.0
  %1523 = vmatpush1.msra.mxu0 0.0
  %1524 = vmatprep.subr.mxu0 0.0
  %1525 = vmatpush1.msra.mxu0 0.0
  %1526 = vmatprep.subr.mxu0 0.0
  %1527 = vmatpush1.msra.mxu0 0.0
  %1528 = vmatprep.subr.mxu0 0.0
  %1529 = vmatpush1.msra.mxu0 0.0
  %1530 = vmatprep.subr.mxu0 0.0
  %1531 = vmatpush1.msra.mxu0 0.0
  %1532 = vmatprep.subr.mxu0 0.0
  %1533 = vmatpush1.msra.mxu0 0.0
  %1534 = vmatprep.subr.mxu0 0.0
  %1535 = vmatpush1.msra.mxu0 0.0
  %1536 = vmatprep.subr.mxu0 0.0
  %1537 = vmatpush1.msra.mxu0 0.0
  %1538 = vmatprep.subr.mxu0 0.0
  %1539 = vmatpush1.msra.mxu0 0.0
  %1540 = vmatprep.subr.mxu0 0.0
  %1541 = vmatpush1.msra.mxu0 0.0
  %1542 = vmatprep.subr.mxu0 0.0
  %1543 = vmatpush1.msra.mxu0 0.0
  %1544 = vmatprep.subr.mxu0 0.0
  %1545 = vmatpush1.msra.mxu0 0.0
  %1546 = vmatprep.subr.mxu0 0.0
  %1547 = vmatpush1.msra.mxu0 0.0
  %1548 = vmatprep.subr.mxu0 0.0
  %1549 = vmatpush1.msra.mxu0 0.0
  %1550 = vmatprep.subr.mxu0 0.0
  %1551 = vmatpush1.msra.mxu0 0.0
  %1552 = vmatprep.subr.mxu0 0.0
  %1553 = vmatpush1.msra.mxu0 0.0
  %1554 = vmatprep.subr.mxu0 0.0
  %1555 = vmatpush1.msra.mxu0 0.0
  %1556 = vmatprep.subr.mxu0 0.0
  %1557 = vmatpush1.msra.mxu0 0.0
  %1558 = vmatprep.subr.mxu0 0.0
  %1559 = vmatpush1.msra.mxu0 0.0
  %1560 = vmatprep.subr.mxu0 0.0
  %1561 = vmatpush1.msra.mxu0 0.0
  %1562 = vmatprep.subr.mxu0 0.0
  %1563 = vmatpush1.msra.mxu0 0.0
  %1564 = vmatprep.subr.mxu0 0.0
  %1565 = vmatpush1.msra.mxu0 0.0
  %1566 = vmatprep.subr.mxu0 0.0
  %1567 = vmatpush1.msra.mxu0 0.0
  %1568 = vmatprep.subr.mxu0 0.0
  %1569 = vmatpush1.msra.mxu0 0.0
  %1570 = vmatprep.subr.mxu0 0.0
  %1571 = vmatpush1.msra.mxu0 0.0
  %1572 = vmatprep.subr.mxu0 0.0
  %1573 = vmatpush1.msra.mxu0 0.0
  %1574 = vmatprep.mubr.f32.mxu0 0.0
  %1575 = vmatmul.mubr.f32.gmra.mrb[0].mxu0 %v1508
  %v1576 = vpop.f32.mrb[0].mxu0
  %v1577 = vadd.f32 0.0, %v1576
  %v1578 = vpop.f32.mrb[0].mxu0
  %1579 = vdwg.mxu0
  %v1581 = vrot.slane %v1577, 2
  %v1583 = vadd.f32 %v1082, %v1581
  %v1584 = vrot.slane %v1180, 2
  %v1586 = vadd.f32 %v1583, %v1584
  %v1587 = vxor.u32 %v1586, 2147483648
  %v1588 = vmul.f32 %v1587, 1.442695
  %v1589 = vpow.pop %v1588
  %v1590 = vadd.f32 %v1589, 1.0
  %v1591 = vrcp.pop %v1590
  %v1592 = vmul.f32 1.0, %v1591
  %v1593 = vtanh.pop %v1586
  %v1595 = vrot.slane %v1497, 6
  %v1597 = vmul.f32 %v1592, %v1595
  %1599 = vrot.lane.b32.xlu0 %v1593, 32
  %v1600 = vpop.permute.xlu0 %1599
  %v1602 = vmul.f32 %v1592, %v1600
  %1604 = vrot.lane.b32.xlu0 %v1602, 32
  %v1605 = vpop.permute.xlu0 %1604
  %v1607 = vadd.f32 %v1597, %v1605
  %v1608 = vtanh.pop %v1607
  %1610 = vrot.lane.b32.xlu0 %v1608, 32
  %v1611 = vpop.permute.xlu0 %1610
  %v1613 = vmul.f32 %v1592, %v1611
  %v1615 = vrot.slane %v1613, 6
  %1616 = vrot.lane.b32.xlu0 %v1615, 64
  %v1617 = vpop.permute.xlu0 %1616
  %v1618 = vsel %vm44, %v1617, 0
  %1620 = vmatprep.subr.mxu0 0.0
  %1621 = vmatpush1.msra.mxu0 %v1090
  %1622 = vmatprep.subr.mxu0 0.0
  %1623 = vmatpush1.msra.mxu0 %v1091
  %1624 = vmatprep.subr.mxu0 0.0
  %1625 = vmatpush1.msra.mxu0 %v1092
  %1626 = vmatprep.subr.mxu0 0.0
  %1627 = vmatpush1.msra.mxu0 %v1093
  %1628 = vmatprep.subr.mxu0 0.0
  %1629 = vmatpush1.msra.mxu0 0.0
  %1630 = vmatprep.subr.mxu0 0.0
  %1631 = vmatpush1.msra.mxu0 0.0
  %1632 = vmatprep.subr.mxu0 0.0
  %1633 = vmatpush1.msra.mxu0 0.0
  %1634 = vmatprep.subr.mxu0 0.0
  %1635 = vmatpush1.msra.mxu0 0.0
  %1636 = vmatprep.subr.mxu0 0.0
  %1637 = vmatpush1.msra.mxu0 0.0
  %1638 = vmatprep.subr.mxu0 0.0
  %1639 = vmatpush1.msra.mxu0 0.0
  %1640 = vmatprep.subr.mxu0 0.0
  %1641 = vmatpush1.msra.mxu0 0.0
  %1642 = vmatprep.subr.mxu0 0.0
  %1643 = vmatpush1.msra.mxu0 0.0
  %1644 = vmatprep.subr.mxu0 0.0
  %1645 = vmatpush1.msra.mxu0 0.0
  %1646 = vmatprep.subr.mxu0 0.0
  %1647 = vmatpush1.msra.mxu0 0.0
  %1648 = vmatprep.subr.mxu0 0.0
  %1649 = vmatpush1.msra.mxu0 0.0
  %1650 = vmatprep.subr.mxu0 0.0
  %1651 = vmatpush1.msra.mxu0 0.0
  %1652 = vmatprep.subr.mxu0 0.0
  %1653 = vmatpush1.msra.mxu0 0.0
  %1654 = vmatprep.subr.mxu0 0.0
  %1655 = vmatpush1.msra.mxu0 0.0
  %1656 = vmatprep.subr.mxu0 0.0
  %1657 = vmatpush1.msra.mxu0 0.0
  %1658 = vmatprep.subr.mxu0 0.0
  %1659 = vmatpush1.msra.mxu0 0.0
  %1660 = vmatprep.subr.mxu0 0.0
  %1661 = vmatpush1.msra.mxu0 0.0
  %1662 = vmatprep.subr.mxu0 0.0
  %1663 = vmatpush1.msra.mxu0 0.0
  %1664 = vmatprep.subr.mxu0 0.0
  %1665 = vmatpush1.msra.mxu0 0.0
  %1666 = vmatprep.subr.mxu0 0.0
  %1667 = vmatpush1.msra.mxu0 0.0
  %1668 = vmatprep.subr.mxu0 0.0
  %1669 = vmatpush1.msra.mxu0 0.0
  %1670 = vmatprep.subr.mxu0 0.0
  %1671 = vmatpush1.msra.mxu0 0.0
  %1672 = vmatprep.subr.mxu0 0.0
  %1673 = vmatpush1.msra.mxu0 0.0
  %1674 = vmatprep.subr.mxu0 0.0
  %1675 = vmatpush1.msra.mxu0 0.0
  %1676 = vmatprep.subr.mxu0 0.0
  %1677 = vmatpush1.msra.mxu0 0.0
  %1678 = vmatprep.subr.mxu0 0.0
  %1679 = vmatpush1.msra.mxu0 0.0
  %1680 = vmatprep.subr.mxu0 0.0
  %1681 = vmatpush1.msra.mxu0 0.0
  %1682 = vmatprep.subr.mxu0 0.0
  %1683 = vmatpush1.msra.mxu0 0.0
  %1684 = vmatprep.mubr.f32.mxu0 0.0
  %1685 = vmatmul.mubr.f32.gmra.mrb[0].mxu0 %v1618
  %v1686 = vpop.f32.mrb[0].mxu0
  %v1687 = vadd.f32 0.0, %v1686
  %v1688 = vpop.f32.mrb[0].mxu0
  %1689 = vdwg.mxu0
  %v1690 = vadd.f32 %v1087, %v1687
  %v1691 = vadd.f32 %v1690, %v1180
  %v1692 = vxor.u32 %v1691, 2147483648
  %v1693 = vmul.f32 %v1692, 1.442695
  %v1694 = vpow.pop %v1693
  %v1695 = vadd.f32 %v1694, 1.0
  %v1696 = vrcp.pop %v1695
  %v1697 = vmul.f32 1.0, %v1696
  %v1698 = vtanh.pop %v1691
  %v1700 = vrot.slane %v1607, 6
  %v1702 = vmul.f32 %v1697, %v1700
  %1704 = vrot.lane.b32.xlu0 %v1698, 32
  %v1705 = vpop.permute.xlu0 %1704
  %v1707 = vmul.f32 %v1697, %v1705
  %1709 = vrot.lane.b32.xlu0 %v1707, 32
  %v1710 = vpop.permute.xlu0 %1709
  %v1712 = vadd.f32 %v1702, %v1710
  %v1713 = vtanh.pop %v1712
  %1715 = vrot.lane.b32.xlu0 %v1713, 32
  %v1716 = vpop.permute.xlu0 %1715
  %v1718 = vmul.f32 %v1697, %v1716
  %1720 = vrot.lane.b32.xlu0 %v1718, 64
  %v1721 = vpop.permute.xlu0 %1720
  %v1722 = vsel %vm44, %v1721, 0
  %1724 = vmatprep.subr.mxu0 0.0
  %1725 = vmatpush1.msra.mxu0 %v1090
  %1726 = vmatprep.subr.mxu0 0.0
  %1727 = vmatpush1.msra.mxu0 %v1091
  %1728 = vmatprep.subr.mxu0 0.0
  %1729 = vmatpush1.msra.mxu0 %v1092
  %1730 = vmatprep.subr.mxu0 0.0
  %1731 = vmatpush1.msra.mxu0 %v1093
  %1732 = vmatprep.subr.mxu0 0.0
  %1733 = vmatpush1.msra.mxu0 0.0
  %1734 = vmatprep.subr.mxu0 0.0
  %1735 = vmatpush1.msra.mxu0 0.0
  %1736 = vmatprep.subr.mxu0 0.0
  %1737 = vmatpush1.msra.mxu0 0.0
  %1738 = vmatprep.subr.mxu0 0.0
  %1739 = vmatpush1.msra.mxu0 0.0
  %1740 = vmatprep.subr.mxu0 0.0
  %1741 = vmatpush1.msra.mxu0 0.0
  %1742 = vmatprep.subr.mxu0 0.0
  %1743 = vmatpush1.msra.mxu0 0.0
  %1744 = vmatprep.subr.mxu0 0.0
  %1745 = vmatpush1.msra.mxu0 0.0
  %1746 = vmatprep.subr.mxu0 0.0
  %1747 = vmatpush1.msra.mxu0 0.0
  %1748 = vmatprep.subr.mxu0 0.0
  %1749 = vmatpush1.msra.mxu0 0.0
  %1750 = vmatprep.subr.mxu0 0.0
  %1751 = vmatpush1.msra.mxu0 0.0
  %1752 = vmatprep.subr.mxu0 0.0
  %1753 = vmatpush1.msra.mxu0 0.0
  %1754 = vmatprep.subr.mxu0 0.0
  %1755 = vmatpush1.msra.mxu0 0.0
  %1756 = vmatprep.subr.mxu0 0.0
  %1757 = vmatpush1.msra.mxu0 0.0
  %1758 = vmatprep.subr.mxu0 0.0
  %1759 = vmatpush1.msra.mxu0 0.0
  %1760 = vmatprep.subr.mxu0 0.0
  %1761 = vmatpush1.msra.mxu0 0.0
  %1762 = vmatprep.subr.mxu0 0.0
  %1763 = vmatpush1.msra.mxu0 0.0
  %1764 = vmatprep.subr.mxu0 0.0
  %1765 = vmatpush1.msra.mxu0 0.0
  %1766 = vmatprep.subr.mxu0 0.0
  %1767 = vmatpush1.msra.mxu0 0.0
  %1768 = vmatprep.subr.mxu0 0.0
  %1769 = vmatpush1.msra.mxu0 0.0
  %1770 = vmatprep.subr.mxu0 0.0
  %1771 = vmatpush1.msra.mxu0 0.0
  %1772 = vmatprep.subr.mxu0 0.0
  %1773 = vmatpush1.msra.mxu0 0.0
  %1774 = vmatprep.subr.mxu0 0.0
  %1775 = vmatpush1.msra.mxu0 0.0
  %1776 = vmatprep.subr.mxu0 0.0
  %1777 = vmatpush1.msra.mxu0 0.0
  %1778 = vmatprep.subr.mxu0 0.0
  %1779 = vmatpush1.msra.mxu0 0.0
  %1780 = vmatprep.subr.mxu0 0.0
  %1781 = vmatpush1.msra.mxu0 0.0
  %1782 = vmatprep.subr.mxu0 0.0
  %1783 = vmatpush1.msra.mxu0 0.0
  %1784 = vmatprep.subr.mxu0 0.0
  %1785 = vmatpush1.msra.mxu0 0.0
  %1786 = vmatprep.subr.mxu0 0.0
  %1787 = vmatpush1.msra.mxu0 0.0
  %1788 = vmatprep.mubr.f32.mxu0 0.0
  %1789 = vmatmul.mubr.f32.gmra.mrb[0].mxu0 %v1722
  %v1790 = vpop.f32.mrb[0].mxu0
  %v1791 = vadd.f32 0.0, %v1790
  %v1792 = vpop.f32.mrb[0].mxu0
  %1793 = vdwg.mxu0
  %v1795 = vrot.slane %v1791, 6
  %v1797 = vadd.f32 %v1087, %v1795
  %v1798 = vadd.f32 %v1797, %v1364
  %v1799 = vxor.u32 %v1798, 2147483648
  %v1800 = vmul.f32 %v1799, 1.442695
  %v1801 = vpow.pop %v1800
  %v1802 = vadd.f32 %v1801, 1.0
  %v1803 = vrcp.pop %v1802
  %v1804 = vmul.f32 1.0, %v1803
  %v1805 = vtanh.pop %v1798
  %v1807 = vrot.slane %v1712, 6
  %v1809 = vmul.f32 %v1804, %v1807
  %1811 = vrot.lane.b32.xlu0 %v1805, 32
  %v1812 = vpop.permute.xlu0 %1811
  %v1814 = vmul.f32 %v1804, %v1812
  %1816 = vrot.lane.b32.xlu0 %v1814, 32
  %v1817 = vpop.permute.xlu0 %1816
  %v1819 = vadd.f32 %v1809, %v1817
  %v1820 = vtanh.pop %v1819
  %1822 = vrot.lane.b32.xlu0 %v1820, 32
  %v1823 = vpop.permute.xlu0 %1822
  %v1825 = vmul.f32 %v1804, %v1823
  %vm1826 = vcmask 1041408
  %v1827 = vsel %vm1826, %v1283, %v1393
  %vm1828 = vcmask 1043456
  %v1829 = vsel %vm1828, %v1827, %v1503
  %vm1830 = vcmask 1045504
  %v1831 = vsel %vm1830, %v1829, %v1613
  %v1832 = vsel %vm1826, %v1718, %v1825
  %v1833 = vsel %vm1828, %v1832, 0.0
  %v1834 = vld [vmem:[%s9] sm:$0xff]
  %v1835 = vld [vmem:[%s9 + $0x8] sm:$0xff]
  %v1836 = vld [vmem:[%s9 + $0x10] sm:$0xff]
  %v1837 = vld [vmem:[%s9 + $0x18] sm:$0xff]
  %v1838 = vld [vmem:[%s10] sm:$0x1]
  %v1840 = vlaneseq
  %v1841 = vshrl.u32 %v1840, 7
  %v1842 = vsub.s32 0, %v1841
  %v1843 = vrot.slane %v1838, %v1842
  %1847 = vrot.lane.b32.xlu0 %v1831, 64
  %v1848 = vpop.permute.xlu0 %1847
  %1849 = vrot.lane.b32.xlu0 %v1833, 64
  %v1850 = vpop.permute.xlu0 %1849
  %v1851 = vsel %vm44, %v1848, 0
  %v1853 = vsel %vm44, %v1850, 0
  %1855 = vmatprep.subr.mxu0 0.0
  %1856 = vmatpush1.msra.mxu0 %v1834
  %1857 = vmatprep.subr.mxu0 0.0
  %1858 = vmatpush1.msra.mxu0 %v1835
  %1859 = vmatprep.subr.mxu0 0.0
  %1860 = vmatpush1.msra.mxu0 %v1836
  %1861 = vmatprep.subr.mxu0 0.0
  %1862 = vmatpush1.msra.mxu0 %v1837
  %1863 = vmatprep.subr.mxu0 0.0
  %1864 = vmatpush1.msra.mxu0 0.0
  %1865 = vmatprep.subr.mxu0 0.0
  %1866 = vmatpush1.msra.mxu0 0.0
  %1867 = vmatprep.subr.mxu0 0.0
  %1868 = vmatpush1.msra.mxu0 0.0
  %1869 = vmatprep.subr.mxu0 0.0
  %1870 = vmatpush1.msra.mxu0 0.0
  %1871 = vmatprep.subr.mxu0 0.0
  %1872 = vmatpush1.msra.mxu0 0.0
  %1873 = vmatprep.subr.mxu0 0.0
  %1874 = vmatpush1.msra.mxu0 0.0
  %1875 = vmatprep.subr.mxu0 0.0
  %1876 = vmatpush1.msra.mxu0 0.0
  %1877 = vmatprep.subr.mxu0 0.0
  %1878 = vmatpush1.msra.mxu0 0.0
  %1879 = vmatprep.subr.mxu0 0.0
  %1880 = vmatpush1.msra.mxu0 0.0
  %1881 = vmatprep.subr.mxu0 0.0
  %1882 = vmatpush1.msra.mxu0 0.0
  %1883 = vmatprep.subr.mxu0 0.0
  %1884 = vmatpush1.msra.mxu0 0.0
  %1885 = vmatprep.subr.mxu0 0.0
  %1886 = vmatpush1.msra.mxu0 0.0
  %1887 = vmatprep.subr.mxu0 0.0
  %1888 = vmatpush1.msra.mxu0 0.0
  %1889 = vmatprep.subr.mxu0 0.0
  %1890 = vmatpush1.msra.mxu0 0.0
  %1891 = vmatprep.subr.mxu0 0.0
  %1892 = vmatpush1.msra.mxu0 0.0
  %1893 = vmatprep.subr.mxu0 0.0
  %1894 = vmatpush1.msra.mxu0 0.0
  %1895 = vmatprep.subr.mxu0 0.0
  %1896 = vmatpush1.msra.mxu0 0.0
  %1897 = vmatprep.subr.mxu0 0.0
  %1898 = vmatpush1.msra.mxu0 0.0
  %1899 = vmatprep.subr.mxu0 0.0
  %1900 = vmatpush1.msra.mxu0 0.0
  %1901 = vmatprep.subr.mxu0 0.0
  %1902 = vmatpush1.msra.mxu0 0.0
  %1903 = vmatprep.subr.mxu0 0.0
  %1904 = vmatpush1.msra.mxu0 0.0
  %1905 = vmatprep.subr.mxu0 0.0
  %1906 = vmatpush1.msra.mxu0 0.0
  %1907 = vmatprep.subr.mxu0 0.0
  %1908 = vmatpush1.msra.mxu0 0.0
  %1909 = vmatprep.subr.mxu0 0.0
  %1910 = vmatpush1.msra.mxu0 0.0
  %1911 = vmatprep.subr.mxu0 0.0
  %1912 = vmatpush1.msra.mxu0 0.0
  %1913 = vmatprep.subr.mxu0 0.0
  %1914 = vmatpush1.msra.mxu0 0.0
  %1915 = vmatprep.subr.mxu0 0.0
  %1916 = vmatpush1.msra.mxu0 0.0
  %1917 = vmatprep.subr.mxu0 0.0
  %1918 = vmatpush1.msra.mxu0 0.0
  %1919 = vmatprep.mubr.f32.mxu0 0.0
  %1920 = vmatmul.mubr.f32.gmra.mrb[0].mxu0 %v1851
  %v1921 = vpop.f32.mrb[0].mxu0
  %v1922 = vadd.f32 %v1843, %v1921
  %v1923 = vpop.f32.mrb[0].mxu0
  %1924 = vmatprep.mubr.f32.mxu0 0.0
  %1925 = vmatmul.mubr.f32.gmra.mrb[0].mxu0 %v1853
  %v1926 = vpop.f32.mrb[0].mxu0
  %v1927 = vadd.f32 %v1843, %v1926
  %v1928 = vpop.f32.mrb[0].mxu0
  %1929 = vdwg.mxu0
  %1930 = vst [vmem:[%s11] sm:$0xff] %v1922
  %1931 = vst [vmem:[%s11 + $0x8] sm:$0xff] %v1927
  // Predicated region
  $region46: #{seq2seq_forward.1} parent=0 // pred_check
    _
  $region47: #{seq2seq_forward.1} parent=0 // pred_check_branch
    %1933 = sbr.rel (0) target = $region49
  $region48: #{seq2seq_forward.1} parent=0 // pred_region
    _
  $region49: #{seq2seq_forward.1} parent=0 // pred_fallthru
    _
  // Predicated region
  $region50: #{seq2seq_forward.1} parent=0 // pred_check
    _
  $region51: #{seq2seq_forward.1} parent=0 // pred_check_branch
    %1935 = sbr.rel (0) target = $region53
  $region52: #{seq2seq_forward.1} parent=0 // pred_region
    _
  $region53: #{seq2seq_forward.1} parent=0 // pred_fallthru
    _

</llo_original>
